<compile_context>
chip_gen: v5e
topology: v5e:2x2
jax: 0.10.0
libtpu: 0.0.40
codegen_flags: <defaults>
</compile_context>

<pallas_src>
import math

import jax
import jax.numpy as jnp
from jax import lax
from jax.experimental import pallas as pl
from jax.experimental.pallas import tpu as pltpu

# ---- small synthetic "deberta-base"-shaped config ---------------------------
HIDDEN = 32
NUM_HEADS = 2
HEAD_DIM = HIDDEN // NUM_HEADS
INTERMEDIATE = 64
NUM_LAYERS = 2
VOCAB = 128
MAX_POS = 64
NUM_CLASSES = 2
LN_EPS = 1e-7          # DeBERTa layer_norm_eps
QKV_PACK = 128         # 3*HIDDEN = 96, padded up to the 128-lane width
CLS_PACK = 128         # NUM_CLASSES = 2, padded up to the 128-lane width
NEG_INF = -1e9


# ------------------------------ kernel helpers --------------------------------
def _layernorm(x, g, b):
    """f32 LayerNorm over the last axis (x: [R, H], g/b: [1, H])."""
    mu = jnp.mean(x, axis=-1, keepdims=True)
    xc = x - mu
    var = jnp.mean(xc * xc, axis=-1, keepdims=True)
    return xc * lax.rsqrt(var + LN_EPS) * g + b


def _mm(a_f32, w_bf16):
    """bf16 MXU matmul with f32 accumulation."""
    return jnp.dot(a_f32.astype(jnp.bfloat16), w_bf16,
                   preferred_element_type=jnp.float32)


def _head_major(t):
    """[rows, HIDDEN] -> [NUM_HEADS*rows, HEAD_DIM], head-major along sublanes."""
    return jnp.concatenate(
        [t[:, h * HEAD_DIM:(h + 1) * HEAD_DIM] for h in range(NUM_HEADS)], axis=0)


def _head_merge(t, rows):
    """[NUM_HEADS*rows, HEAD_DIM] -> [rows, HIDDEN] (standard head concat)."""
    return jnp.concatenate(
        [t[h * rows:(h + 1) * rows, :] for h in range(NUM_HEADS)], axis=1)


def _attention(q_bd, k_bd, v_bd, add_bias):
    """Block-diagonal multi-head SDPA: one score matmul, one softmax, one P.V."""
    s = lax.dot_general(q_bd.astype(jnp.bfloat16), k_bd.astype(jnp.bfloat16),
                        (((1,), (1,)), ((), ())),
                        preferred_element_type=jnp.float32) + add_bias
    m = jnp.max(s, axis=-1, keepdims=True)
    e = jnp.exp(s - m)
    p = e * pl.reciprocal(jnp.sum(e, axis=-1, keepdims=True), approx=False)
    return jnp.dot(p.astype(jnp.bfloat16), v_bd.astype(jnp.bfloat16),
                   preferred_element_type=jnp.float32)


def _ffn(x, w1, b1, w2, b2):
    # TODO(synk): HF DeBERTa uses exact erf GELU; tanh approximation used here
    # for robust Mosaic lowering (numerically ~identical).
    h = jax.nn.gelu(_mm(x, w1) + b1, approximate=True)
    return _mm(h, w2) + b2


def _make_kernel(B, S):
    R = B * S

    def kernel(emb_ref, bias_ref, bias_cls_ref,
               emb_g_ref, emb_b_ref,
               wqkv_ref, bqkv_ref,
               wo_ref, bo_ref,
               ln1g_ref, ln1b_ref,
               w1_ref, b1_ref,
               w2_ref, b2_ref,
               ln2g_ref, ln2b_ref,
               cls_w_ref, cls_b_ref,
               out_ref):
        # Single invocation: whole (batch*seq) activation and all weights in VMEM.
        x = _layernorm(emb_ref[...].astype(jnp.float32),
                       emb_g_ref[...], emb_b_ref[...])        # [R, H] f32
        bias = bias_ref[...]                                  # [NH*R, NH*R]
        bias_cls = bias_cls_ref[...]                          # [NH*B, NH*R]

        # ---- all layers except the last: full B*S rows ----------------------
        for l in range(NUM_LAYERS - 1):                       # static unroll
            qkv = _mm(x, wqkv_ref[l]) + bqkv_ref[l]           # [R, 128], 96 used
            q_bd = _head_major(qkv[:, 0:HIDDEN])              # [NH*R, DH]
            k_bd = _head_major(qkv[:, HIDDEN:2 * HIDDEN])
            v_bd = _head_major(qkv[:, 2 * HIDDEN:3 * HIDDEN])
            ctx = _head_merge(_attention(q_bd, k_bd, v_bd, bias), R)   # [R, H]
            attn = _mm(ctx, wo_ref[l]) + bo_ref[l]
            x = _layernorm(attn + x, ln1g_ref[l], ln1b_ref[l])
            x = _layernorm(_ffn(x, w1_ref[l], b1_ref[l], w2_ref[l], b2_ref[l]) + x,
                           ln2g_ref[l], ln2b_ref[l])

        # ---- last layer: only CLS rows (row b*S) feed the classifier --------
        l = NUM_LAYERS - 1
        qkv = _mm(x, wqkv_ref[l]) + bqkv_ref[l]               # [R, 128]
        k_bd = _head_major(qkv[:, HIDDEN:2 * HIDDEN])         # keys: all rows
        v_bd = _head_major(qkv[:, 2 * HIDDEN:3 * HIDDEN])     # values: all rows
        q_cls = jnp.concatenate(                              # queries: CLS rows only
            [qkv[b * S:b * S + 1, 0:HIDDEN] for b in range(B)], axis=0)   # [B, H]
        x_cls = jnp.concatenate(
            [x[b * S:b * S + 1, :] for b in range(B)], axis=0)            # [B, H]
        ctx = _head_merge(_attention(_head_major(q_cls), k_bd, v_bd, bias_cls), B)
        attn = _mm(ctx, wo_ref[l]) + bo_ref[l]
        xc = _layernorm(attn + x_cls, ln1g_ref[l], ln1b_ref[l])
        pooled = _layernorm(
            _ffn(xc, w1_ref[l], b1_ref[l], w2_ref[l], b2_ref[l]) + xc,
            ln2g_ref[l], ln2b_ref[l])                                      # [B, H]

        # CLS pooling done above; Dropout(0.1) is identity at inference.
        logits = _mm(pooled, cls_w_ref[...]) + cls_b_ref[...]              # [B, 128]
        out_ref[...] = logits.astype(out_ref.dtype)

    return kernel


# ----------------------------- parameter init --------------------------------
def init_params(key):
    def w_init(k, shape):
        return 0.02 * jax.random.normal(k, shape, jnp.float32)

    H, I, L = HIDDEN, INTERMEDIATE, NUM_LAYERS
    keys = jax.random.split(key, 3 + L)
    params = {
        "word_emb": w_init(keys[0], (VOCAB, H)),
        "pos_emb": w_init(keys[1], (MAX_POS, H)),
        "emb_ln_g": jnp.ones((1, H), jnp.float32),
        "emb_ln_b": jnp.zeros((1, H), jnp.float32),
    }
    # classifier head, N padded to 128 lanes (sliced back outside the kernel)
    cls_w = w_init(keys[2], (H, NUM_CLASSES))
    params["cls_w"] = (jnp.zeros((H, CLS_PACK), jnp.float32)
                       .at[:, :NUM_CLASSES].set(cls_w)).astype(jnp.bfloat16)
    params["cls_b"] = jnp.zeros((1, CLS_PACK), jnp.float32)

    scale = 1.0 / math.sqrt(HEAD_DIM)
    wqkv, bqkv, wo, bo = [], [], [], []
    ln1g, ln1b, w1, b1, w2, b2, ln2g, ln2b = [], [], [], [], [], [], [], []
    for l in range(L):
        lk = jax.random.split(keys[3 + l], 6)
        wq = w_init(lk[0], (H, H)) * scale          # fold 1/sqrt(DH) into Q proj
        wk = w_init(lk[1], (H, H))
        wv = w_init(lk[2], (H, H))
        packed = (jnp.zeros((H, QKV_PACK), jnp.float32)
                  .at[:, :3 * H].set(jnp.concatenate([wq, wk, wv], axis=1)))
        wqkv.append(packed)
        bqkv.append(jnp.zeros((1, QKV_PACK), jnp.float32))   # (Q bias would also be scaled)
        wo.append(w_init(lk[3], (H, H)))
        bo.append(jnp.zeros((1, H), jnp.float32))
        ln1g.append(jnp.ones((1, H), jnp.float32)); ln1b.append(jnp.zeros((1, H), jnp.float32))
        w1.append(w_init(lk[4], (H, I))); b1.append(jnp.zeros((1, I), jnp.float32))
        w2.append(w_init(lk[5], (I, H))); b2.append(jnp.zeros((1, H), jnp.float32))
        ln2g.append(jnp.ones((1, H), jnp.float32)); ln2b.append(jnp.zeros((1, H), jnp.float32))

    params.update({
        "wqkv": jnp.stack(wqkv).astype(jnp.bfloat16), "bqkv": jnp.stack(bqkv),
        "wo": jnp.stack(wo).astype(jnp.bfloat16),     "bo": jnp.stack(bo),
        "ln1_g": jnp.stack(ln1g), "ln1_b": jnp.stack(ln1b),
        "w1": jnp.stack(w1).astype(jnp.bfloat16),     "b1": jnp.stack(b1),
        "w2": jnp.stack(w2).astype(jnp.bfloat16),     "b2": jnp.stack(b2),
        "ln2_g": jnp.stack(ln2g), "ln2_b": jnp.stack(ln2b),
    })
    return params


# ------------------------------ forward pass ---------------------------------
def deberta_classifier_forward(params, input_ids, attention_mask):
    B, S = input_ids.shape
    R = B * S
    NHR = NUM_HEADS * R
    NHB = NUM_HEADS * B

    # Glue: embedding gather (+ absolute position embeddings), batch folded
    # into the sublane axis.
    # TODO(synk): at real shapes move this gather into the kernel (scalar
    # prefetch + row gather) to avoid an extra HBM round trip.
    emb = (jnp.take(params["word_emb"], input_ids, axis=0)
           + params["pos_emb"][None, :S, :]).reshape(R, HIDDEN)

    # Block-diagonal additive attention bias, precomputed ONCE at full score
    # shape: key j is visible to query i iff same head, same batch element, and
    # key position is unmasked.  No in-kernel broadcasts are needed.
    key_valid = attention_mask.reshape(R) > 0
    col_row = jnp.arange(NHR) % R
    col_head = jnp.arange(NHR) // R
    col_batch = col_row // S
    col_valid = key_valid[col_row]
    ok_full = ((col_head[:, None] == col_head[None, :])
               & (col_batch[:, None] == col_batch[None, :])
               & col_valid[None, :])
    bias_full = jnp.where(ok_full, 0.0, NEG_INF).astype(jnp.float32)   # [NHR, NHR]

    # Same bias but only for the CLS query rows of the last layer
    # (row ordering = head-major, i.e. index h*B + b).
    cls_head = jnp.arange(NHB) // B
    cls_batch = jnp.arange(NHB) % B
    ok_cls = ((cls_head[:, None] == col_head[None, :])
              & (cls_batch[:, None] == col_batch[None, :])
              & col_valid[None, :])
    bias_cls = jnp.where(ok_cls, 0.0, NEG_INF).astype(jnp.float32)     # [NHB, NHR]

    operands = (emb, bias_full, bias_cls,
                params["emb_ln_g"], params["emb_ln_b"],
                params["wqkv"], params["bqkv"],
                params["wo"], params["bo"],
                params["ln1_g"], params["ln1_b"],
                params["w1"], params["b1"],
                params["w2"], params["b2"],
                params["ln2_g"], params["ln2_b"],
                params["cls_w"], params["cls_b"])

    # Single grid step; every operand is one whole-array VMEM block.
    # TODO(synk): at scale, single-buffer constant-index weight blocks
    # (pipeline_mode=pl.Buffered(1)) / stream per-layer weights.
    def whole(a):
        nd = a.ndim
        return pl.BlockSpec(a.shape, lambda i, _n=nd: (0,) * _n)

    out = pl.pallas_call(
        _make_kernel(B, S),
        out_shape=jax.ShapeDtypeStruct((B, CLS_PACK), jnp.float32),
        grid=(1,),
        in_specs=[whole(a) for a in operands],
        out_specs=pl.BlockSpec((B, CLS_PACK), lambda i: (0, 0)),
        compiler_params=pltpu.CompilerParams(
            dimension_semantics=("arbitrary",)),
    )(*operands)

    return out[:, :NUM_CLASSES]                               # [B, NUM_CLASSES]


# --------------------------------- driver ------------------------------------
if __name__ == "__main__":
    key = jax.random.PRNGKey(0)
    pkey, ikey = jax.random.split(key)
    params = init_params(pkey)

    B, S = 2, 8
    input_ids = jax.random.randint(ikey, (B, S), 0, VOCAB, dtype=jnp.int32)
    # simple padding pattern: second sequence has 2 padded positions
    attention_mask = jnp.array(
        [[1, 1, 1, 1, 1, 1, 1, 1],
         [1, 1, 1, 1, 1, 1, 0, 0]], dtype=jnp.int32)

    fwd = jax.jit(deberta_classifier_forward)
    logits = fwd(params, input_ids, attention_mask)
    jax.block_until_ready(logits)
    assert logits.shape == (B, NUM_CLASSES)
    assert bool(jnp.all(jnp.isfinite(logits)))
    print("KERNEL_OK")
</pallas_src>

<mosaic_0001>
module attributes {stable_mosaic.version = 11 : i64} {
  func.func @kernel(%arg0: i32, %arg1: memref<16x32xf32, #tpu.memory_space<vmem>>, %arg2: memref<32x32xf32, #tpu.memory_space<vmem>>, %arg3: memref<4x32xf32, #tpu.memory_space<vmem>>, %arg4: memref<1x32xf32, #tpu.memory_space<vmem>>, %arg5: memref<1x32xf32, #tpu.memory_space<vmem>>, %arg6: memref<2x32x128xbf16, #tpu.memory_space<vmem>>, %arg7: memref<2x1x128xf32, #tpu.memory_space<vmem>>, %arg8: memref<2x32x32xbf16, #tpu.memory_space<vmem>>, %arg9: memref<2x1x32xf32, #tpu.memory_space<vmem>>, %arg10: memref<2x1x32xf32, #tpu.memory_space<vmem>>, %arg11: memref<2x1x32xf32, #tpu.memory_space<vmem>>, %arg12: memref<2x32x64xbf16, #tpu.memory_space<vmem>>, %arg13: memref<2x1x64xf32, #tpu.memory_space<vmem>>, %arg14: memref<2x64x32xbf16, #tpu.memory_space<vmem>>, %arg15: memref<2x1x32xf32, #tpu.memory_space<vmem>>, %arg16: memref<2x1x32xf32, #tpu.memory_space<vmem>>, %arg17: memref<2x1x32xf32, #tpu.memory_space<vmem>>, %arg18: memref<32x128xbf16, #tpu.memory_space<vmem>>, %arg19: memref<1x128xf32, #tpu.memory_space<vmem>>, %arg20: memref<2x128xf32, #tpu.memory_space<vmem>>) attributes {dimension_semantics = [#tpu.dimension_semantics<arbitrary>], iteration_bounds = array<i64: 1>, scalar_prefetch = 0 : i64, scratch_operands = 0 : i64, tpu.core_type = #tpu.core_type<tc>, window_params = [{pipeline_mode = #tpu.pipeline_mode<synchronous>, transform_indices = @transform_0, window_bounds = array<i64: 16, 32>}, {pipeline_mode = #tpu.pipeline_mode<synchronous>, transform_indices = @transform_1, window_bounds = array<i64: 32, 32>}, {pipeline_mode = #tpu.pipeline_mode<synchronous>, transform_indices = @transform_2, window_bounds = array<i64: 4, 32>}, {pipeline_mode = #tpu.pipeline_mode<synchronous>, transform_indices = @transform_3, window_bounds = array<i64: 1, 32>}, {pipeline_mode = #tpu.pipeline_mode<synchronous>, transform_indices = @transform_4, window_bounds = array<i64: 1, 32>}, {pipeline_mode = #tpu.pipeline_mode<synchronous>, transform_indices = @transform_5, window_bounds = array<i64: 2, 32, 128>}, {pipeline_mode = #tpu.pipeline_mode<synchronous>, transform_indices = @transform_6, window_bounds = array<i64: 2, 1, 128>}, {pipeline_mode = #tpu.pipeline_mode<synchronous>, transform_indices = @transform_7, window_bounds = array<i64: 2, 32, 32>}, {pipeline_mode = #tpu.pipeline_mode<synchronous>, transform_indices = @transform_8, window_bounds = array<i64: 2, 1, 32>}, {pipeline_mode = #tpu.pipeline_mode<synchronous>, transform_indices = @transform_9, window_bounds = array<i64: 2, 1, 32>}, {pipeline_mode = #tpu.pipeline_mode<synchronous>, transform_indices = @transform_10, window_bounds = array<i64: 2, 1, 32>}, {pipeline_mode = #tpu.pipeline_mode<synchronous>, transform_indices = @transform_11, window_bounds = array<i64: 2, 32, 64>}, {pipeline_mode = #tpu.pipeline_mode<synchronous>, transform_indices = @transform_12, window_bounds = array<i64: 2, 1, 64>}, {pipeline_mode = #tpu.pipeline_mode<synchronous>, transform_indices = @transform_13, window_bounds = array<i64: 2, 64, 32>}, {pipeline_mode = #tpu.pipeline_mode<synchronous>, transform_indices = @transform_14, window_bounds = array<i64: 2, 1, 32>}, {pipeline_mode = #tpu.pipeline_mode<synchronous>, transform_indices = @transform_15, window_bounds = array<i64: 2, 1, 32>}, {pipeline_mode = #tpu.pipeline_mode<synchronous>, transform_indices = @transform_16, window_bounds = array<i64: 2, 1, 32>}, {pipeline_mode = #tpu.pipeline_mode<synchronous>, transform_indices = @transform_17, window_bounds = array<i64: 32, 128>}, {pipeline_mode = #tpu.pipeline_mode<synchronous>, transform_indices = @transform_18, window_bounds = array<i64: 1, 128>}, {pipeline_mode = #tpu.pipeline_mode<synchronous>, transform_indices = @transform_19, window_bounds = array<i64: 2, 128>}]} {
    %c0 = arith.constant 0 : index
    %c0_0 = arith.constant 0 : index
    %0 = vector.load %arg1[%c0, %c0_0] : memref<16x32xf32, #tpu.memory_space<vmem>>, vector<16x32xf32>
    %c0_1 = arith.constant 0 : index
    %c0_2 = arith.constant 0 : index
    %1 = vector.load %arg4[%c0_1, %c0_2] : memref<1x32xf32, #tpu.memory_space<vmem>>, vector<1x32xf32>
    %c0_3 = arith.constant 0 : index
    %c0_4 = arith.constant 0 : index
    %2 = vector.load %arg5[%c0_3, %c0_4] : memref<1x32xf32, #tpu.memory_space<vmem>>, vector<1x32xf32>
    %cst = arith.constant dense<0.000000e+00> : vector<16xf32>
    %3 = vector.multi_reduction <add>, %0, %cst [1] : vector<16x32xf32> to vector<16xf32>
    %4 = vector.shape_cast %3 : vector<16xf32> to vector<16x1xf32>
    %cst_5 = arith.constant 3.200000e+01 : f32
    %5 = vector.broadcast %cst_5 : f32 to vector<16x1xf32>
    %6 = arith.divf %4, %5 : vector<16x1xf32>
    %7 = vector.broadcast %6 : vector<16x1xf32> to vector<16x32xf32>
    %8 = arith.subf %0, %7 : vector<16x32xf32>
    %9 = arith.mulf %8, %8 : vector<16x32xf32>
    %cst_6 = arith.constant dense<0.000000e+00> : vector<16xf32>
    %10 = vector.multi_reduction <add>, %9, %cst_6 [1] : vector<16x32xf32> to vector<16xf32>
    %11 = vector.shape_cast %10 : vector<16xf32> to vector<16x1xf32>
    %cst_7 = arith.constant 3.200000e+01 : f32
    %12 = vector.broadcast %cst_7 : f32 to vector<16x1xf32>
    %13 = arith.divf %11, %12 : vector<16x1xf32>
    %cst_8 = arith.constant 1.000000e-07 : f32
    %14 = vector.broadcast %cst_8 : f32 to vector<16x1xf32>
    %15 = arith.addf %13, %14 : vector<16x1xf32>
    %16 = math.rsqrt %15 : vector<16x1xf32>
    %17 = vector.broadcast %16 : vector<16x1xf32> to vector<16x32xf32>
    %18 = arith.mulf %8, %17 : vector<16x32xf32>
    %19 = vector.broadcast %1 : vector<1x32xf32> to vector<16x32xf32>
    %20 = arith.mulf %18, %19 : vector<16x32xf32>
    %21 = vector.broadcast %2 : vector<1x32xf32> to vector<16x32xf32>
    %22 = arith.addf %20, %21 : vector<16x32xf32>
    %c0_9 = arith.constant 0 : index
    %c0_10 = arith.constant 0 : index
    %23 = vector.load %arg2[%c0_9, %c0_10] : memref<32x32xf32, #tpu.memory_space<vmem>>, vector<32x32xf32>
    %c0_11 = arith.constant 0 : index
    %c0_12 = arith.constant 0 : index
    %24 = vector.load %arg3[%c0_11, %c0_12] : memref<4x32xf32, #tpu.memory_space<vmem>>, vector<4x32xf32>
    %c0_13 = arith.constant 0 : index
    %c0_14 = arith.constant 0 : index
    %c0_15 = arith.constant 0 : index
    %25 = vector.load %arg6[%c0_13, %c0_14, %c0_15] : memref<2x32x128xbf16, #tpu.memory_space<vmem>>, vector<1x32x128xbf16>
    %26 = vector.shape_cast %25 : vector<1x32x128xbf16> to vector<32x128xbf16>
    %27 = arith.truncf %22 : vector<16x32xf32> to vector<16x32xbf16>
    %cst_16 = arith.constant dense<0.000000e+00> : vector<16x128xf32>
    %28 = tpu.matmul %27, %26, %cst_16 {dimension_numbers = #tpu.dot_dimension_numbers<[1], [0], [0], [1], [0, 0, 1, 1], [], []>} : vector<16x32xbf16>, vector<32x128xbf16>, vector<16x128xf32> -> vector<16x128xf32>
    %c0_17 = arith.constant 0 : index
    %c0_18 = arith.constant 0 : index
    %c0_19 = arith.constant 0 : index
    %29 = vector.load %arg7[%c0_17, %c0_18, %c0_19] : memref<2x1x128xf32, #tpu.memory_space<vmem>>, vector<1x1x128xf32>
    %30 = vector.shape_cast %29 : vector<1x1x128xf32> to vector<1x128xf32>
    %31 = vector.broadcast %30 : vector<1x128xf32> to vector<16x128xf32>
    %32 = arith.addf %28, %31 : vector<16x128xf32>
    %33 = vector.extract_strided_slice %32 {offsets = [0, 0], sizes = [16, 32], strides = [1, 1]} : vector<16x128xf32> to vector<16x32xf32>
    %34 = vector.extract_strided_slice %33 {offsets = [0, 0], sizes = [16, 16], strides = [1, 1]} : vector<16x32xf32> to vector<16x16xf32>
    %35 = vector.extract_strided_slice %33 {offsets = [0, 16], sizes = [16, 16], strides = [1, 1]} : vector<16x32xf32> to vector<16x16xf32>
    %36 = tpu.concatenate %34, %35 in 0 : vector<16x16xf32>, vector<16x16xf32> -> vector<32x16xf32>
    %37 = vector.extract_strided_slice %32 {offsets = [0, 32], sizes = [16, 32], strides = [1, 1]} : vector<16x128xf32> to vector<16x32xf32>
    %38 = vector.extract_strided_slice %37 {offsets = [0, 0], sizes = [16, 16], strides = [1, 1]} : vector<16x32xf32> to vector<16x16xf32>
    %39 = vector.extract_strided_slice %37 {offsets = [0, 16], sizes = [16, 16], strides = [1, 1]} : vector<16x32xf32> to vector<16x16xf32>
    %40 = tpu.concatenate %38, %39 in 0 : vector<16x16xf32>, vector<16x16xf32> -> vector<32x16xf32>
    %41 = vector.extract_strided_slice %32 {offsets = [0, 64], sizes = [16, 32], strides = [1, 1]} : vector<16x128xf32> to vector<16x32xf32>
    %42 = vector.extract_strided_slice %41 {offsets = [0, 0], sizes = [16, 16], strides = [1, 1]} : vector<16x32xf32> to vector<16x16xf32>
    %43 = vector.extract_strided_slice %41 {offsets = [0, 16], sizes = [16, 16], strides = [1, 1]} : vector<16x32xf32> to vector<16x16xf32>
    %44 = tpu.concatenate %42, %43 in 0 : vector<16x16xf32>, vector<16x16xf32> -> vector<32x16xf32>
    %45 = arith.truncf %36 : vector<32x16xf32> to vector<32x16xbf16>
    %46 = arith.truncf %40 : vector<32x16xf32> to vector<32x16xbf16>
    %cst_20 = arith.constant dense<0.000000e+00> : vector<32x32xf32>
    %47 = tpu.matmul %45, %46, %cst_20 {dimension_numbers = #tpu.dot_dimension_numbers<[1], [1], [0], [0], [0, 0, 1, 0], [], []>} : vector<32x16xbf16>, vector<32x16xbf16>, vector<32x32xf32> -> vector<32x32xf32>
    %48 = arith.addf %47, %23 : vector<32x32xf32>
    %cst_21 = arith.constant dense<0xFF800000> : vector<32xf32>
    %49 = vector.multi_reduction <maximumf>, %48, %cst_21 [1] : vector<32x32xf32> to vector<32xf32>
    %50 = vector.shape_cast %49 : vector<32xf32> to vector<32x1xf32>
    %51 = vector.broadcast %50 : vector<32x1xf32> to vector<32x32xf32>
    %52 = arith.subf %48, %51 : vector<32x32xf32>
    %53 = math.exp %52 : vector<32x32xf32>
    %cst_22 = arith.constant dense<0.000000e+00> : vector<32xf32>
    %54 = vector.multi_reduction <add>, %53, %cst_22 [1] : vector<32x32xf32> to vector<32xf32>
    %55 = vector.shape_cast %54 : vector<32xf32> to vector<32x1xf32>
    %56 = tpu.reciprocal %55 : vector<32x1xf32> -> vector<32x1xf32>
    %57 = vector.broadcast %56 : vector<32x1xf32> to vector<32x32xf32>
    %58 = arith.mulf %53, %57 : vector<32x32xf32>
    %59 = arith.truncf %58 : vector<32x32xf32> to vector<32x32xbf16>
    %60 = arith.truncf %44 : vector<32x16xf32> to vector<32x16xbf16>
    %cst_23 = arith.constant dense<0.000000e+00> : vector<32x16xf32>
    %61 = tpu.matmul %59, %60, %cst_23 {dimension_numbers = #tpu.dot_dimension_numbers<[1], [0], [0], [1], [0, 0, 1, 1], [], []>} : vector<32x32xbf16>, vector<32x16xbf16>, vector<32x16xf32> -> vector<32x16xf32>
    %62 = vector.extract_strided_slice %61 {offsets = [0, 0], sizes = [16, 16], strides = [1, 1]} : vector<32x16xf32> to vector<16x16xf32>
    %63 = vector.extract_strided_slice %61 {offsets = [16, 0], sizes = [16, 16], strides = [1, 1]} : vector<32x16xf32> to vector<16x16xf32>
    %64 = tpu.concatenate %62, %63 in 1 : vector<16x16xf32>, vector<16x16xf32> -> vector<16x32xf32>
    %c0_24 = arith.constant 0 : index
    %c0_25 = arith.constant 0 : index
    %c0_26 = arith.constant 0 : index
    %65 = vector.load %arg8[%c0_24, %c0_25, %c0_26] : memref<2x32x32xbf16, #tpu.memory_space<vmem>>, vector<1x32x32xbf16>
    %66 = vector.shape_cast %65 : vector<1x32x32xbf16> to vector<32x32xbf16>
    %67 = arith.truncf %64 : vector<16x32xf32> to vector<16x32xbf16>
    %cst_27 = arith.constant dense<0.000000e+00> : vector<16x32xf32>
    %68 = tpu.matmul %67, %66, %cst_27 {dimension_numbers = #tpu.dot_dimension_numbers<[1], [0], [0], [1], [0, 0, 1, 1], [], []>} : vector<16x32xbf16>, vector<32x32xbf16>, vector<16x32xf32> -> vector<16x32xf32>
    %c0_28 = arith.constant 0 : index
    %c0_29 = arith.constant 0 : index
    %c0_30 = arith.constant 0 : index
    %69 = vector.load %arg9[%c0_28, %c0_29, %c0_30] : memref<2x1x32xf32, #tpu.memory_space<vmem>>, vector<1x1x32xf32>
    %70 = vector.shape_cast %69 : vector<1x1x32xf32> to vector<1x32xf32>
    %71 = vector.broadcast %70 : vector<1x32xf32> to vector<16x32xf32>
    %72 = arith.addf %68, %71 : vector<16x32xf32>
    %73 = arith.addf %72, %22 : vector<16x32xf32>
    %c0_31 = arith.constant 0 : index
    %c0_32 = arith.constant 0 : index
    %c0_33 = arith.constant 0 : index
    %74 = vector.load %arg10[%c0_31, %c0_32, %c0_33] : memref<2x1x32xf32, #tpu.memory_space<vmem>>, vector<1x1x32xf32>
    %75 = vector.shape_cast %74 : vector<1x1x32xf32> to vector<1x32xf32>
    %c0_34 = arith.constant 0 : index
    %c0_35 = arith.constant 0 : index
    %c0_36 = arith.constant 0 : index
    %76 = vector.load %arg11[%c0_34, %c0_35, %c0_36] : memref<2x1x32xf32, #tpu.memory_space<vmem>>, vector<1x1x32xf32>
    %77 = vector.shape_cast %76 : vector<1x1x32xf32> to vector<1x32xf32>
    %cst_37 = arith.constant dense<0.000000e+00> : vector<16xf32>
    %78 = vector.multi_reduction <add>, %73, %cst_37 [1] : vector<16x32xf32> to vector<16xf32>
    %79 = vector.shape_cast %78 : vector<16xf32> to vector<16x1xf32>
    %cst_38 = arith.constant 3.200000e+01 : f32
    %80 = vector.broadcast %cst_38 : f32 to vector<16x1xf32>
    %81 = arith.divf %79, %80 : vector<16x1xf32>
    %82 = vector.broadcast %81 : vector<16x1xf32> to vector<16x32xf32>
    %83 = arith.subf %73, %82 : vector<16x32xf32>
    %84 = arith.mulf %83, %83 : vector<16x32xf32>
    %cst_39 = arith.constant dense<0.000000e+00> : vector<16xf32>
    %85 = vector.multi_reduction <add>, %84, %cst_39 [1] : vector<16x32xf32> to vector<16xf32>
    %86 = vector.shape_cast %85 : vector<16xf32> to vector<16x1xf32>
    %cst_40 = arith.constant 3.200000e+01 : f32
    %87 = vector.broadcast %cst_40 : f32 to vector<16x1xf32>
    %88 = arith.divf %86, %87 : vector<16x1xf32>
    %cst_41 = arith.constant 1.000000e-07 : f32
    %89 = vector.broadcast %cst_41 : f32 to vector<16x1xf32>
    %90 = arith.addf %88, %89 : vector<16x1xf32>
    %91 = math.rsqrt %90 : vector<16x1xf32>
    %92 = vector.broadcast %91 : vector<16x1xf32> to vector<16x32xf32>
    %93 = arith.mulf %83, %92 : vector<16x32xf32>
    %94 = vector.broadcast %75 : vector<1x32xf32> to vector<16x32xf32>
    %95 = arith.mulf %93, %94 : vector<16x32xf32>
    %96 = vector.broadcast %77 : vector<1x32xf32> to vector<16x32xf32>
    %97 = arith.addf %95, %96 : vector<16x32xf32>
    %c0_42 = arith.constant 0 : index
    %c0_43 = arith.constant 0 : index
    %c0_44 = arith.constant 0 : index
    %98 = vector.load %arg12[%c0_42, %c0_43, %c0_44] : memref<2x32x64xbf16, #tpu.memory_space<vmem>>, vector<1x32x64xbf16>
    %99 = vector.shape_cast %98 : vector<1x32x64xbf16> to vector<32x64xbf16>
    %c0_45 = arith.constant 0 : index
    %c0_46 = arith.constant 0 : index
    %c0_47 = arith.constant 0 : index
    %100 = vector.load %arg13[%c0_45, %c0_46, %c0_47] : memref<2x1x64xf32, #tpu.memory_space<vmem>>, vector<1x1x64xf32>
    %101 = vector.shape_cast %100 : vector<1x1x64xf32> to vector<1x64xf32>
    %c0_48 = arith.constant 0 : index
    %c0_49 = arith.constant 0 : index
    %c0_50 = arith.constant 0 : index
    %102 = vector.load %arg14[%c0_48, %c0_49, %c0_50] : memref<2x64x32xbf16, #tpu.memory_space<vmem>>, vector<1x64x32xbf16>
    %103 = vector.shape_cast %102 : vector<1x64x32xbf16> to vector<64x32xbf16>
    %c0_51 = arith.constant 0 : index
    %c0_52 = arith.constant 0 : index
    %c0_53 = arith.constant 0 : index
    %104 = vector.load %arg15[%c0_51, %c0_52, %c0_53] : memref<2x1x32xf32, #tpu.memory_space<vmem>>, vector<1x1x32xf32>
    %105 = vector.shape_cast %104 : vector<1x1x32xf32> to vector<1x32xf32>
    %106 = arith.truncf %97 : vector<16x32xf32> to vector<16x32xbf16>
    %cst_54 = arith.constant dense<0.000000e+00> : vector<16x64xf32>
    %107 = tpu.matmul %106, %99, %cst_54 {dimension_numbers = #tpu.dot_dimension_numbers<[1], [0], [0], [1], [0, 0, 1, 1], [], []>} : vector<16x32xbf16>, vector<32x64xbf16>, vector<16x64xf32> -> vector<16x64xf32>
    %108 = vector.broadcast %101 : vector<1x64xf32> to vector<16x64xf32>
    %109 = arith.addf %107, %108 : vector<16x64xf32>
    %110 = arith.mulf %109, %109 : vector<16x64xf32>
    %111 = arith.mulf %109, %110 : vector<16x64xf32>
    %cst_55 = arith.constant 4.471500e-02 : f32
    %112 = vector.broadcast %cst_55 : f32 to vector<16x64xf32>
    %113 = arith.mulf %112, %111 : vector<16x64xf32>
    %114 = arith.addf %109, %113 : vector<16x64xf32>
    %cst_56 = arith.constant 0.797884583 : f32
    %115 = vector.broadcast %cst_56 : f32 to vector<16x64xf32>
    %116 = arith.mulf %115, %114 : vector<16x64xf32>
    %117 = math.tanh %116 : vector<16x64xf32>
    %cst_57 = arith.constant 1.000000e+00 : f32
    %118 = vector.broadcast %cst_57 : f32 to vector<16x64xf32>
    %119 = arith.addf %118, %117 : vector<16x64xf32>
    %cst_58 = arith.constant 5.000000e-01 : f32
    %120 = vector.broadcast %cst_58 : f32 to vector<16x64xf32>
    %121 = arith.mulf %120, %119 : vector<16x64xf32>
    %122 = arith.mulf %109, %121 : vector<16x64xf32>
    %123 = arith.truncf %122 : vector<16x64xf32> to vector<16x64xbf16>
    %cst_59 = arith.constant dense<0.000000e+00> : vector<16x32xf32>
    %124 = tpu.matmul %123, %103, %cst_59 {dimension_numbers = #tpu.dot_dimension_numbers<[1], [0], [0], [1], [0, 0, 1, 1], [], []>} : vector<16x64xbf16>, vector<64x32xbf16>, vector<16x32xf32> -> vector<16x32xf32>
    %125 = vector.broadcast %105 : vector<1x32xf32> to vector<16x32xf32>
    %126 = arith.addf %124, %125 : vector<16x32xf32>
    %127 = arith.addf %126, %97 : vector<16x32xf32>
    %c0_60 = arith.constant 0 : index
    %c0_61 = arith.constant 0 : index
    %c0_62 = arith.constant 0 : index
    %128 = vector.load %arg16[%c0_60, %c0_61, %c0_62] : memref<2x1x32xf32, #tpu.memory_space<vmem>>, vector<1x1x32xf32>
    %129 = vector.shape_cast %128 : vector<1x1x32xf32> to vector<1x32xf32>
    %c0_63 = arith.constant 0 : index
    %c0_64 = arith.constant 0 : index
    %c0_65 = arith.constant 0 : index
    %130 = vector.load %arg17[%c0_63, %c0_64, %c0_65] : memref<2x1x32xf32, #tpu.memory_space<vmem>>, vector<1x1x32xf32>
    %131 = vector.shape_cast %130 : vector<1x1x32xf32> to vector<1x32xf32>
    %cst_66 = arith.constant dense<0.000000e+00> : vector<16xf32>
    %132 = vector.multi_reduction <add>, %127, %cst_66 [1] : vector<16x32xf32> to vector<16xf32>
    %133 = vector.shape_cast %132 : vector<16xf32> to vector<16x1xf32>
    %cst_67 = arith.constant 3.200000e+01 : f32
    %134 = vector.broadcast %cst_67 : f32 to vector<16x1xf32>
    %135 = arith.divf %133, %134 : vector<16x1xf32>
    %136 = vector.broadcast %135 : vector<16x1xf32> to vector<16x32xf32>
    %137 = arith.subf %127, %136 : vector<16x32xf32>
    %138 = arith.mulf %137, %137 : vector<16x32xf32>
    %cst_68 = arith.constant dense<0.000000e+00> : vector<16xf32>
    %139 = vector.multi_reduction <add>, %138, %cst_68 [1] : vector<16x32xf32> to vector<16xf32>
    %140 = vector.shape_cast %139 : vector<16xf32> to vector<16x1xf32>
    %cst_69 = arith.constant 3.200000e+01 : f32
    %141 = vector.broadcast %cst_69 : f32 to vector<16x1xf32>
    %142 = arith.divf %140, %141 : vector<16x1xf32>
    %cst_70 = arith.constant 1.000000e-07 : f32
    %143 = vector.broadcast %cst_70 : f32 to vector<16x1xf32>
    %144 = arith.addf %142, %143 : vector<16x1xf32>
    %145 = math.rsqrt %144 : vector<16x1xf32>
    %146 = vector.broadcast %145 : vector<16x1xf32> to vector<16x32xf32>
    %147 = arith.mulf %137, %146 : vector<16x32xf32>
    %148 = vector.broadcast %129 : vector<1x32xf32> to vector<16x32xf32>
    %149 = arith.mulf %147, %148 : vector<16x32xf32>
    %150 = vector.broadcast %131 : vector<1x32xf32> to vector<16x32xf32>
    %151 = arith.addf %149, %150 : vector<16x32xf32>
    %c1 = arith.constant 1 : index
    %c0_71 = arith.constant 0 : index
    %c0_72 = arith.constant 0 : index
    %152 = vector.load %arg6[%c1, %c0_71, %c0_72] : memref<2x32x128xbf16, #tpu.memory_space<vmem>>, vector<1x32x128xbf16>
    %153 = vector.shape_cast %152 : vector<1x32x128xbf16> to vector<32x128xbf16>
    %154 = arith.truncf %151 : vector<16x32xf32> to vector<16x32xbf16>
    %cst_73 = arith.constant dense<0.000000e+00> : vector<16x128xf32>
    %155 = tpu.matmul %154, %153, %cst_73 {dimension_numbers = #tpu.dot_dimension_numbers<[1], [0], [0], [1], [0, 0, 1, 1], [], []>} : vector<16x32xbf16>, vector<32x128xbf16>, vector<16x128xf32> -> vector<16x128xf32>
    %c1_74 = arith.constant 1 : index
    %c0_75 = arith.constant 0 : index
    %c0_76 = arith.constant 0 : index
    %156 = vector.load %arg7[%c1_74, %c0_75, %c0_76] : memref<2x1x128xf32, #tpu.memory_space<vmem>>, vector<1x1x128xf32>
    %157 = vector.shape_cast %156 : vector<1x1x128xf32> to vector<1x128xf32>
    %158 = vector.broadcast %157 : vector<1x128xf32> to vector<16x128xf32>
    %159 = arith.addf %155, %158 : vector<16x128xf32>
    %160 = vector.extract_strided_slice %159 {offsets = [0, 32], sizes = [16, 32], strides = [1, 1]} : vector<16x128xf32> to vector<16x32xf32>
    %161 = vector.extract_strided_slice %160 {offsets = [0, 0], sizes = [16, 16], strides = [1, 1]} : vector<16x32xf32> to vector<16x16xf32>
    %162 = vector.extract_strided_slice %160 {offsets = [0, 16], sizes = [16, 16], strides = [1, 1]} : vector<16x32xf32> to vector<16x16xf32>
    %163 = tpu.concatenate %161, %162 in 0 : vector<16x16xf32>, vector<16x16xf32> -> vector<32x16xf32>
    %164 = vector.extract_strided_slice %159 {offsets = [0, 64], sizes = [16, 32], strides = [1, 1]} : vector<16x128xf32> to vector<16x32xf32>
    %165 = vector.extract_strided_slice %164 {offsets = [0, 0], sizes = [16, 16], strides = [1, 1]} : vector<16x32xf32> to vector<16x16xf32>
    %166 = vector.extract_strided_slice %164 {offsets = [0, 16], sizes = [16, 16], strides = [1, 1]} : vector<16x32xf32> to vector<16x16xf32>
    %167 = tpu.concatenate %165, %166 in 0 : vector<16x16xf32>, vector<16x16xf32> -> vector<32x16xf32>
    %168 = vector.extract_strided_slice %159 {offsets = [0, 0], sizes = [1, 32], strides = [1, 1]} : vector<16x128xf32> to vector<1x32xf32>
    %169 = vector.extract_strided_slice %159 {offsets = [8, 0], sizes = [1, 32], strides = [1, 1]} : vector<16x128xf32> to vector<1x32xf32>
    %170 = tpu.concatenate %168, %169 in 0 : vector<1x32xf32>, vector<1x32xf32> -> vector<2x32xf32>
    %171 = vector.extract_strided_slice %151 {offsets = [0, 0], sizes = [1, 32], strides = [1, 1]} : vector<16x32xf32> to vector<1x32xf32>
    %172 = vector.extract_strided_slice %151 {offsets = [8, 0], sizes = [1, 32], strides = [1, 1]} : vector<16x32xf32> to vector<1x32xf32>
    %173 = tpu.concatenate %171, %172 in 0 : vector<1x32xf32>, vector<1x32xf32> -> vector<2x32xf32>
    %174 = vector.extract_strided_slice %170 {offsets = [0, 0], sizes = [2, 16], strides = [1, 1]} : vector<2x32xf32> to vector<2x16xf32>
    %175 = vector.extract_strided_slice %170 {offsets = [0, 16], sizes = [2, 16], strides = [1, 1]} : vector<2x32xf32> to vector<2x16xf32>
    %176 = tpu.concatenate %174, %175 in 0 : vector<2x16xf32>, vector<2x16xf32> -> vector<4x16xf32>
    %177 = arith.truncf %176 : vector<4x16xf32> to vector<4x16xbf16>
    %178 = arith.truncf %163 : vector<32x16xf32> to vector<32x16xbf16>
    %cst_77 = arith.constant dense<0.000000e+00> : vector<4x32xf32>
    %179 = tpu.matmul %177, %178, %cst_77 {dimension_numbers = #tpu.dot_dimension_numbers<[1], [1], [0], [0], [0, 0, 1, 0], [], []>} : vector<4x16xbf16>, vector<32x16xbf16>, vector<4x32xf32> -> vector<4x32xf32>
    %180 = arith.addf %179, %24 : vector<4x32xf32>
    %cst_78 = arith.constant dense<0xFF800000> : vector<4xf32>
    %181 = vector.multi_reduction <maximumf>, %180, %cst_78 [1] : vector<4x32xf32> to vector<4xf32>
    %182 = vector.shape_cast %181 : vector<4xf32> to vector<4x1xf32>
    %183 = vector.broadcast %182 : vector<4x1xf32> to vector<4x32xf32>
    %184 = arith.subf %180, %183 : vector<4x32xf32>
    %185 = math.exp %184 : vector<4x32xf32>
    %cst_79 = arith.constant dense<0.000000e+00> : vector<4xf32>
    %186 = vector.multi_reduction <add>, %185, %cst_79 [1] : vector<4x32xf32> to vector<4xf32>
    %187 = vector.shape_cast %186 : vector<4xf32> to vector<4x1xf32>
    %188 = tpu.reciprocal %187 : vector<4x1xf32> -> vector<4x1xf32>
    %189 = vector.broadcast %188 : vector<4x1xf32> to vector<4x32xf32>
    %190 = arith.mulf %185, %189 : vector<4x32xf32>
    %191 = arith.truncf %190 : vector<4x32xf32> to vector<4x32xbf16>
    %192 = arith.truncf %167 : vector<32x16xf32> to vector<32x16xbf16>
    %cst_80 = arith.constant dense<0.000000e+00> : vector<4x16xf32>
    %193 = tpu.matmul %191, %192, %cst_80 {dimension_numbers = #tpu.dot_dimension_numbers<[1], [0], [0], [1], [0, 0, 1, 1], [], []>} : vector<4x32xbf16>, vector<32x16xbf16>, vector<4x16xf32> -> vector<4x16xf32>
    %194 = vector.extract_strided_slice %193 {offsets = [0, 0], sizes = [2, 16], strides = [1, 1]} : vector<4x16xf32> to vector<2x16xf32>
    %195 = vector.extract_strided_slice %193 {offsets = [2, 0], sizes = [2, 16], strides = [1, 1]} : vector<4x16xf32> to vector<2x16xf32>
    %196 = tpu.concatenate %194, %195 in 1 : vector<2x16xf32>, vector<2x16xf32> -> vector<2x32xf32>
    %c1_81 = arith.constant 1 : index
    %c0_82 = arith.constant 0 : index
    %c0_83 = arith.constant 0 : index
    %197 = vector.load %arg8[%c1_81, %c0_82, %c0_83] : memref<2x32x32xbf16, #tpu.memory_space<vmem>>, vector<1x32x32xbf16>
    %198 = vector.shape_cast %197 : vector<1x32x32xbf16> to vector<32x32xbf16>
    %199 = arith.truncf %196 : vector<2x32xf32> to vector<2x32xbf16>
    %cst_84 = arith.constant dense<0.000000e+00> : vector<2x32xf32>
    %200 = tpu.matmul %199, %198, %cst_84 {dimension_numbers = #tpu.dot_dimension_numbers<[1], [0], [0], [1], [0, 0, 1, 1], [], []>} : vector<2x32xbf16>, vector<32x32xbf16>, vector<2x32xf32> -> vector<2x32xf32>
    %c1_85 = arith.constant 1 : index
    %c0_86 = arith.constant 0 : index
    %c0_87 = arith.constant 0 : index
    %201 = vector.load %arg9[%c1_85, %c0_86, %c0_87] : memref<2x1x32xf32, #tpu.memory_space<vmem>>, vector<1x1x32xf32>
    %202 = vector.shape_cast %201 : vector<1x1x32xf32> to vector<1x32xf32>
    %203 = vector.broadcast %202 : vector<1x32xf32> to vector<2x32xf32>
    %204 = arith.addf %200, %203 : vector<2x32xf32>
    %205 = arith.addf %204, %173 : vector<2x32xf32>
    %c1_88 = arith.constant 1 : index
    %c0_89 = arith.constant 0 : index
    %c0_90 = arith.constant 0 : index
    %206 = vector.load %arg10[%c1_88, %c0_89, %c0_90] : memref<2x1x32xf32, #tpu.memory_space<vmem>>, vector<1x1x32xf32>
    %207 = vector.shape_cast %206 : vector<1x1x32xf32> to vector<1x32xf32>
    %c1_91 = arith.constant 1 : index
    %c0_92 = arith.constant 0 : index
    %c0_93 = arith.constant 0 : index
    %208 = vector.load %arg11[%c1_91, %c0_92, %c0_93] : memref<2x1x32xf32, #tpu.memory_space<vmem>>, vector<1x1x32xf32>
    %209 = vector.shape_cast %208 : vector<1x1x32xf32> to vector<1x32xf32>
    %cst_94 = arith.constant dense<0.000000e+00> : vector<2xf32>
    %210 = vector.multi_reduction <add>, %205, %cst_94 [1] : vector<2x32xf32> to vector<2xf32>
    %211 = vector.shape_cast %210 : vector<2xf32> to vector<2x1xf32>
    %cst_95 = arith.constant 3.200000e+01 : f32
    %212 = vector.broadcast %cst_95 : f32 to vector<2x1xf32>
    %213 = arith.divf %211, %212 : vector<2x1xf32>
    %214 = vector.broadcast %213 : vector<2x1xf32> to vector<2x32xf32>
    %215 = arith.subf %205, %214 : vector<2x32xf32>
    %216 = arith.mulf %215, %215 : vector<2x32xf32>
    %cst_96 = arith.constant dense<0.000000e+00> : vector<2xf32>
    %217 = vector.multi_reduction <add>, %216, %cst_96 [1] : vector<2x32xf32> to vector<2xf32>
    %218 = vector.shape_cast %217 : vector<2xf32> to vector<2x1xf32>
    %cst_97 = arith.constant 3.200000e+01 : f32
    %219 = vector.broadcast %cst_97 : f32 to vector<2x1xf32>
    %220 = arith.divf %218, %219 : vector<2x1xf32>
    %cst_98 = arith.constant 1.000000e-07 : f32
    %221 = vector.broadcast %cst_98 : f32 to vector<2x1xf32>
    %222 = arith.addf %220, %221 : vector<2x1xf32>
    %223 = math.rsqrt %222 : vector<2x1xf32>
    %224 = vector.broadcast %223 : vector<2x1xf32> to vector<2x32xf32>
    %225 = arith.mulf %215, %224 : vector<2x32xf32>
    %226 = vector.broadcast %207 : vector<1x32xf32> to vector<2x32xf32>
    %227 = arith.mulf %225, %226 : vector<2x32xf32>
    %228 = vector.broadcast %209 : vector<1x32xf32> to vector<2x32xf32>
    %229 = arith.addf %227, %228 : vector<2x32xf32>
    %c1_99 = arith.constant 1 : index
    %c0_100 = arith.constant 0 : index
    %c0_101 = arith.constant 0 : index
    %230 = vector.load %arg12[%c1_99, %c0_100, %c0_101] : memref<2x32x64xbf16, #tpu.memory_space<vmem>>, vector<1x32x64xbf16>
    %231 = vector.shape_cast %230 : vector<1x32x64xbf16> to vector<32x64xbf16>
    %c1_102 = arith.constant 1 : index
    %c0_103 = arith.constant 0 : index
    %c0_104 = arith.constant 0 : index
    %232 = vector.load %arg13[%c1_102, %c0_103, %c0_104] : memref<2x1x64xf32, #tpu.memory_space<vmem>>, vector<1x1x64xf32>
    %233 = vector.shape_cast %232 : vector<1x1x64xf32> to vector<1x64xf32>
    %c1_105 = arith.constant 1 : index
    %c0_106 = arith.constant 0 : index
    %c0_107 = arith.constant 0 : index
    %234 = vector.load %arg14[%c1_105, %c0_106, %c0_107] : memref<2x64x32xbf16, #tpu.memory_space<vmem>>, vector<1x64x32xbf16>
    %235 = vector.shape_cast %234 : vector<1x64x32xbf16> to vector<64x32xbf16>
    %c1_108 = arith.constant 1 : index
    %c0_109 = arith.constant 0 : index
    %c0_110 = arith.constant 0 : index
    %236 = vector.load %arg15[%c1_108, %c0_109, %c0_110] : memref<2x1x32xf32, #tpu.memory_space<vmem>>, vector<1x1x32xf32>
    %237 = vector.shape_cast %236 : vector<1x1x32xf32> to vector<1x32xf32>
    %238 = arith.truncf %229 : vector<2x32xf32> to vector<2x32xbf16>
    %cst_111 = arith.constant dense<0.000000e+00> : vector<2x64xf32>
    %239 = tpu.matmul %238, %231, %cst_111 {dimension_numbers = #tpu.dot_dimension_numbers<[1], [0], [0], [1], [0, 0, 1, 1], [], []>} : vector<2x32xbf16>, vector<32x64xbf16>, vector<2x64xf32> -> vector<2x64xf32>
    %240 = vector.broadcast %233 : vector<1x64xf32> to vector<2x64xf32>
    %241 = arith.addf %239, %240 : vector<2x64xf32>
    %242 = arith.mulf %241, %241 : vector<2x64xf32>
    %243 = arith.mulf %241, %242 : vector<2x64xf32>
    %cst_112 = arith.constant 4.471500e-02 : f32
    %244 = vector.broadcast %cst_112 : f32 to vector<2x64xf32>
    %245 = arith.mulf %244, %243 : vector<2x64xf32>
    %246 = arith.addf %241, %245 : vector<2x64xf32>
    %cst_113 = arith.constant 0.797884583 : f32
    %247 = vector.broadcast %cst_113 : f32 to vector<2x64xf32>
    %248 = arith.mulf %247, %246 : vector<2x64xf32>
    %249 = math.tanh %248 : vector<2x64xf32>
    %cst_114 = arith.constant 1.000000e+00 : f32
    %250 = vector.broadcast %cst_114 : f32 to vector<2x64xf32>
    %251 = arith.addf %250, %249 : vector<2x64xf32>
    %cst_115 = arith.constant 5.000000e-01 : f32
    %252 = vector.broadcast %cst_115 : f32 to vector<2x64xf32>
    %253 = arith.mulf %252, %251 : vector<2x64xf32>
    %254 = arith.mulf %241, %253 : vector<2x64xf32>
    %255 = arith.truncf %254 : vector<2x64xf32> to vector<2x64xbf16>
    %cst_116 = arith.constant dense<0.000000e+00> : vector<2x32xf32>
    %256 = tpu.matmul %255, %235, %cst_116 {dimension_numbers = #tpu.dot_dimension_numbers<[1], [0], [0], [1], [0, 0, 1, 1], [], []>} : vector<2x64xbf16>, vector<64x32xbf16>, vector<2x32xf32> -> vector<2x32xf32>
    %257 = vector.broadcast %237 : vector<1x32xf32> to vector<2x32xf32>
    %258 = arith.addf %256, %257 : vector<2x32xf32>
    %259 = arith.addf %258, %229 : vector<2x32xf32>
    %c1_117 = arith.constant 1 : index
    %c0_118 = arith.constant 0 : index
    %c0_119 = arith.constant 0 : index
    %260 = vector.load %arg16[%c1_117, %c0_118, %c0_119] : memref<2x1x32xf32, #tpu.memory_space<vmem>>, vector<1x1x32xf32>
    %261 = vector.shape_cast %260 : vector<1x1x32xf32> to vector<1x32xf32>
    %c1_120 = arith.constant 1 : index
    %c0_121 = arith.constant 0 : index
    %c0_122 = arith.constant 0 : index
    %262 = vector.load %arg17[%c1_120, %c0_121, %c0_122] : memref<2x1x32xf32, #tpu.memory_space<vmem>>, vector<1x1x32xf32>
    %263 = vector.shape_cast %262 : vector<1x1x32xf32> to vector<1x32xf32>
    %cst_123 = arith.constant dense<0.000000e+00> : vector<2xf32>
    %264 = vector.multi_reduction <add>, %259, %cst_123 [1] : vector<2x32xf32> to vector<2xf32>
    %265 = vector.shape_cast %264 : vector<2xf32> to vector<2x1xf32>
    %cst_124 = arith.constant 3.200000e+01 : f32
    %266 = vector.broadcast %cst_124 : f32 to vector<2x1xf32>
    %267 = arith.divf %265, %266 : vector<2x1xf32>
    %268 = vector.broadcast %267 : vector<2x1xf32> to vector<2x32xf32>
    %269 = arith.subf %259, %268 : vector<2x32xf32>
    %270 = arith.mulf %269, %269 : vector<2x32xf32>
    %cst_125 = arith.constant dense<0.000000e+00> : vector<2xf32>
    %271 = vector.multi_reduction <add>, %270, %cst_125 [1] : vector<2x32xf32> to vector<2xf32>
    %272 = vector.shape_cast %271 : vector<2xf32> to vector<2x1xf32>
    %cst_126 = arith.constant 3.200000e+01 : f32
    %273 = vector.broadcast %cst_126 : f32 to vector<2x1xf32>
    %274 = arith.divf %272, %273 : vector<2x1xf32>
    %cst_127 = arith.constant 1.000000e-07 : f32
    %275 = vector.broadcast %cst_127 : f32 to vector<2x1xf32>
    %276 = arith.addf %274, %275 : vector<2x1xf32>
    %277 = math.rsqrt %276 : vector<2x1xf32>
    %278 = vector.broadcast %277 : vector<2x1xf32> to vector<2x32xf32>
    %279 = arith.mulf %269, %278 : vector<2x32xf32>
    %280 = vector.broadcast %261 : vector<1x32xf32> to vector<2x32xf32>
    %281 = arith.mulf %279, %280 : vector<2x32xf32>
    %282 = vector.broadcast %263 : vector<1x32xf32> to vector<2x32xf32>
    %283 = arith.addf %281, %282 : vector<2x32xf32>
    %c0_128 = arith.constant 0 : index
    %c0_129 = arith.constant 0 : index
    %284 = vector.load %arg18[%c0_128, %c0_129] : memref<32x128xbf16, #tpu.memory_space<vmem>>, vector<32x128xbf16>
    %285 = arith.truncf %283 : vector<2x32xf32> to vector<2x32xbf16>
    %cst_130 = arith.constant dense<0.000000e+00> : vector<2x128xf32>
    %286 = tpu.matmul %285, %284, %cst_130 {dimension_numbers = #tpu.dot_dimension_numbers<[1], [0], [0], [1], [0, 0, 1, 1], [], []>} : vector<2x32xbf16>, vector<32x128xbf16>, vector<2x128xf32> -> vector<2x128xf32>
    %c0_131 = arith.constant 0 : index
    %c0_132 = arith.constant 0 : index
    %287 = vector.load %arg19[%c0_131, %c0_132] : memref<1x128xf32, #tpu.memory_space<vmem>>, vector<1x128xf32>
    %288 = vector.broadcast %287 : vector<1x128xf32> to vector<2x128xf32>
    %289 = arith.addf %286, %288 : vector<2x128xf32>
    %c0_133 = arith.constant 0 : index
    %c0_134 = arith.constant 0 : index
    %290 = vector.load %arg20[%c0_133, %c0_134] : memref<2x128xf32, #tpu.memory_space<vmem>>, vector<2x128xf32>
    tpu.vector_store %arg20[%c0_133, %c0_134], %289 {strides = array<i32>} : memref<2x128xf32, #tpu.memory_space<vmem>>, vector<2x128xf32>,
    return
  }
  func.func @transform_0(%arg0: i32) -> (i32, i32) {
    %c0_i32 = arith.constant 0 : i32
    %c0_i32_0 = arith.constant 0 : i32
    %c0_i32_1 = arith.constant 0 : i32
    return %c0_i32, %c0_i32_0 : i32, i32
  }
  func.func @transform_1(%arg0: i32) -> (i32, i32) {
    %c0_i32 = arith.constant 0 : i32
    %c0_i32_0 = arith.constant 0 : i32
    %c0_i32_1 = arith.constant 0 : i32
    return %c0_i32, %c0_i32_0 : i32, i32
  }
  func.func @transform_2(%arg0: i32) -> (i32, i32) {
    %c0_i32 = arith.constant 0 : i32
    %c0_i32_0 = arith.constant 0 : i32
    %c0_i32_1 = arith.constant 0 : i32
    return %c0_i32, %c0_i32_0 : i32, i32
  }
  func.func @transform_3(%arg0: i32) -> (i32, i32) {
    %c0_i32 = arith.constant 0 : i32
    %c0_i32_0 = arith.constant 0 : i32
    %c0_i32_1 = arith.constant 0 : i32
    return %c0_i32, %c0_i32_0 : i32, i32
  }
  func.func @transform_4(%arg0: i32) -> (i32, i32) {
    %c0_i32 = arith.constant 0 : i32
    %c0_i32_0 = arith.constant 0 : i32
    %c0_i32_1 = arith.constant 0 : i32
    return %c0_i32, %c0_i32_0 : i32, i32
  }
  func.func @transform_5(%arg0: i32) -> (i32, i32, i32) {
    %c0_i32 = arith.constant 0 : i32
    %c0_i32_0 = arith.constant 0 : i32
    %c0_i32_1 = arith.constant 0 : i32
    %c0_i32_2 = arith.constant 0 : i32
    return %c0_i32, %c0_i32_0, %c0_i32_1 : i32, i32, i32
  }
  func.func @transform_6(%arg0: i32) -> (i32, i32, i32) {
    %c0_i32 = arith.constant 0 : i32
    %c0_i32_0 = arith.constant 0 : i32
    %c0_i32_1 = arith.constant 0 : i32
    %c0_i32_2 = arith.constant 0 : i32
    return %c0_i32, %c0_i32_0, %c0_i32_1 : i32, i32, i32
  }
  func.func @transform_7(%arg0: i32) -> (i32, i32, i32) {
    %c0_i32 = arith.constant 0 : i32
    %c0_i32_0 = arith.constant 0 : i32
    %c0_i32_1 = arith.constant 0 : i32
    %c0_i32_2 = arith.constant 0 : i32
    return %c0_i32, %c0_i32_0, %c0_i32_1 : i32, i32, i32
  }
  func.func @transform_8(%arg0: i32) -> (i32, i32, i32) {
    %c0_i32 = arith.constant 0 : i32
    %c0_i32_0 = arith.constant 0 : i32
    %c0_i32_1 = arith.constant 0 : i32
    %c0_i32_2 = arith.constant 0 : i32
    return %c0_i32, %c0_i32_0, %c0_i32_1 : i32, i32, i32
  }
  func.func @transform_9(%arg0: i32) -> (i32, i32, i32) {
    %c0_i32 = arith.constant 0 : i32
    %c0_i32_0 = arith.constant 0 : i32
    %c0_i32_1 = arith.constant 0 : i32
    %c0_i32_2 = arith.constant 0 : i32
    return %c0_i32, %c0_i32_0, %c0_i32_1 : i32, i32, i32
  }
  func.func @transform_10(%arg0: i32) -> (i32, i32, i32) {
    %c0_i32 = arith.constant 0 : i32
    %c0_i32_0 = arith.constant 0 : i32
    %c0_i32_1 = arith.constant 0 : i32
    %c0_i32_2 = arith.constant 0 : i32
    return %c0_i32, %c0_i32_0, %c0_i32_1 : i32, i32, i32
  }
  func.func @transform_11(%arg0: i32) -> (i32, i32, i32) {
    %c0_i32 = arith.constant 0 : i32
    %c0_i32_0 = arith.constant 0 : i32
    %c0_i32_1 = arith.constant 0 : i32
    %c0_i32_2 = arith.constant 0 : i32
    return %c0_i32, %c0_i32_0, %c0_i32_1 : i32, i32, i32
  }
  func.func @transform_12(%arg0: i32) -> (i32, i32, i32) {
    %c0_i32 = arith.constant 0 : i32
    %c0_i32_0 = arith.constant 0 : i32
    %c0_i32_1 = arith.constant 0 : i32
    %c0_i32_2 = arith.constant 0 : i32
    return %c0_i32, %c0_i32_0, %c0_i32_1 : i32, i32, i32
  }
  func.func @transform_13(%arg0: i32) -> (i32, i32, i32) {
    %c0_i32 = arith.constant 0 : i32
    %c0_i32_0 = arith.constant 0 : i32
    %c0_i32_1 = arith.constant 0 : i32
    %c0_i32_2 = arith.constant 0 : i32
    return %c0_i32, %c0_i32_0, %c0_i32_1 : i32, i32, i32
  }
  func.func @transform_14(%arg0: i32) -> (i32, i32, i32) {
    %c0_i32 = arith.constant 0 : i32
    %c0_i32_0 = arith.constant 0 : i32
    %c0_i32_1 = arith.constant 0 : i32
    %c0_i32_2 = arith.constant 0 : i32
    return %c0_i32, %c0_i32_0, %c0_i32_1 : i32, i32, i32
  }
  func.func @transform_15(%arg0: i32) -> (i32, i32, i32) {
    %c0_i32 = arith.constant 0 : i32
    %c0_i32_0 = arith.constant 0 : i32
    %c0_i32_1 = arith.constant 0 : i32
    %c0_i32_2 = arith.constant 0 : i32
    return %c0_i32, %c0_i32_0, %c0_i32_1 : i32, i32, i32
  }
  func.func @transform_16(%arg0: i32) -> (i32, i32, i32) {
    %c0_i32 = arith.constant 0 : i32
    %c0_i32_0 = arith.constant 0 : i32
    %c0_i32_1 = arith.constant 0 : i32
    %c0_i32_2 = arith.constant 0 : i32
    return %c0_i32, %c0_i32_0, %c0_i32_1 : i32, i32, i32
  }
  func.func @transform_17(%arg0: i32) -> (i32, i32) {
    %c0_i32 = arith.constant 0 : i32
    %c0_i32_0 = arith.constant 0 : i32
    %c0_i32_1 = arith.constant 0 : i32
    return %c0_i32, %c0_i32_0 : i32, i32
  }
  func.func @transform_18(%arg0: i32) -> (i32, i32) {
    %c0_i32 = arith.constant 0 : i32
    %c0_i32_0 = arith.constant 0 : i32
    %c0_i32_1 = arith.constant 0 : i32
    return %c0_i32, %c0_i32_0 : i32, i32
  }
  func.func @transform_19(%arg0: i32) -> (i32, i32) {
    %c0_i32 = arith.constant 0 : i32
    %c0_i32_0 = arith.constant 0 : i32
    %c0_i32_1 = arith.constant 0 : i32
    return %c0_i32, %c0_i32_0 : i32, i32
  }
}

</mosaic_0001>

<llo_original>
// kernel: deberta_classifier_forward.1
$region0: #{deberta_classifier_forward.1}
  #allocation0 [shape = 'u32[]', space=smem, size = 0x4, offset = 0x4, fixed_abs, tag = 'smem constant byte address 0x4 - core index']
  #allocation1 [shape = 'u32[72,128]{1,0:T(1,128)}', space=vmem, size = 0x9000, scoped, tag = 'internal scratch']
  %s0 = inlined_call_operand.vmem [shape: f32[16,32], index: 0, kind: input, shape index: {}]
  %s1 = inlined_call_operand.vmem [shape: f32[32,32], index: 1, kind: input, shape index: {}]
  %s2 = inlined_call_operand.vmem [shape: f32[4,32], index: 2, kind: input, shape index: {}]
  %s3 = inlined_call_operand.vmem [shape: f32[1,32], index: 3, kind: input, shape index: {}]
  %s4 = inlined_call_operand.vmem [shape: f32[1,32], index: 4, kind: input, shape index: {}]
  %s5 = inlined_call_operand.vmem [shape: bf16[2,32,128], index: 5, kind: input, shape index: {}]
  %s6 = inlined_call_operand.vmem [shape: f32[2,1,128], index: 6, kind: input, shape index: {}]
  %s7 = inlined_call_operand.vmem [shape: bf16[2,32,32], index: 7, kind: input, shape index: {}]
  %s8 = inlined_call_operand.vmem [shape: f32[2,1,32], index: 8, kind: input, shape index: {}]
  %s9 = inlined_call_operand.vmem [shape: f32[2,1,32], index: 9, kind: input, shape index: {}]
  %s10 = inlined_call_operand.vmem [shape: f32[2,1,32], index: 10, kind: input, shape index: {}]
  %s11 = inlined_call_operand.vmem [shape: bf16[2,32,64], index: 11, kind: input, shape index: {}]
  %s12 = inlined_call_operand.vmem [shape: f32[2,1,64], index: 12, kind: input, shape index: {}]
  %s13 = inlined_call_operand.vmem [shape: bf16[2,64,32], index: 13, kind: input, shape index: {}]
  %s14 = inlined_call_operand.vmem [shape: f32[2,1,32], index: 14, kind: input, shape index: {}]
  %s15 = inlined_call_operand.vmem [shape: f32[2,1,32], index: 15, kind: input, shape index: {}]
  %s16 = inlined_call_operand.vmem [shape: f32[2,1,32], index: 16, kind: input, shape index: {}]
  %s17 = inlined_call_operand.vmem [shape: bf16[32,128], index: 17, kind: input, shape index: {}]
  %s18 = inlined_call_operand.vmem [shape: f32[1,128], index: 18, kind: input, shape index: {}]
  %s19 = inlined_call_operand.hbm [shape: f32[2,128], index: 19, kind: output, shape index: {}]
  %s20 = sld [smem:[#allocation0]]
  $region86: #{deberta_classifier_forward.1} parent=0
    _
  %s22 = ssub.s32 1, %s20
  %s23 = scalar_select 0, %s22, %s20
  $region1: #{deberta_classifier_forward.1} parent=0
    #allocation2 [shape = 'u8[1024]{0}', space=vmem, size = 0x400, scoped, tag = 'output window, operand 0, single buffered']
    #allocation3 [shape = 's32[1]{0}', space=sflag, size = 0x4, scoped, tag = 'scoped memory for deberta_classifier_forward.1']
    %24 = vsyncpa [#allocation3], 0
    // Predicated region
    $region2: #{deberta_classifier_forward.1} parent=1 // pred_check
      _
    $region3: #{deberta_classifier_forward.1} parent=1 // pred_check_branch
      %26 = sbr.rel (0) target = $region5
    $region4: #{deberta_classifier_forward.1} parent=1 // pred_region
      _
    $region5: #{deberta_classifier_forward.1} parent=1 // pred_fallthru
      _
    // Predicated region
    $region6: #{deberta_classifier_forward.1} parent=1 // pred_check
      _
    $region7: #{deberta_classifier_forward.1} parent=1 // pred_check_branch
      %28 = sbr.rel (0) target = $region9
    $region8: #{deberta_classifier_forward.1} parent=1 // pred_region
      _
    $region9: #{deberta_classifier_forward.1} parent=1 // pred_fallthru
      _
    // Predicated region
    $region10: #{deberta_classifier_forward.1} parent=1 // pred_check
      _
    $region11: #{deberta_classifier_forward.1} parent=1 // pred_check_branch
      %30 = sbr.rel (0) target = $region13
    $region12: #{deberta_classifier_forward.1} parent=1 // pred_region
      _
    $region13: #{deberta_classifier_forward.1} parent=1 // pred_fallthru
      _
    // Predicated region
    $region14: #{deberta_classifier_forward.1} parent=1 // pred_check
      _
    $region15: #{deberta_classifier_forward.1} parent=1 // pred_check_branch
      %32 = sbr.rel (0) target = $region17
    $region16: #{deberta_classifier_forward.1} parent=1 // pred_region
      _
    $region17: #{deberta_classifier_forward.1} parent=1 // pred_fallthru
      _
    // Predicated region
    $region18: #{deberta_classifier_forward.1} parent=1 // pred_check
      _
    $region19: #{deberta_classifier_forward.1} parent=1 // pred_check_branch
      %34 = sbr.rel (0) target = $region21
    $region20: #{deberta_classifier_forward.1} parent=1 // pred_region
      _
    $region21: #{deberta_classifier_forward.1} parent=1 // pred_fallthru
      _
    // Predicated region
    $region22: #{deberta_classifier_forward.1} parent=1 // pred_check
      _
    $region23: #{deberta_classifier_forward.1} parent=1 // pred_check_branch
      %36 = sbr.rel (0) target = $region25
    $region24: #{deberta_classifier_forward.1} parent=1 // pred_region
      _
    $region25: #{deberta_classifier_forward.1} parent=1 // pred_fallthru
      _
    // Predicated region
    $region26: #{deberta_classifier_forward.1} parent=1 // pred_check
      _
    $region27: #{deberta_classifier_forward.1} parent=1 // pred_check_branch
      %38 = sbr.rel (0) target = $region29
    $region28: #{deberta_classifier_forward.1} parent=1 // pred_region
      _
    $region29: #{deberta_classifier_forward.1} parent=1 // pred_fallthru
      _
    // Predicated region
    $region30: #{deberta_classifier_forward.1} parent=1 // pred_check
      _
    $region31: #{deberta_classifier_forward.1} parent=1 // pred_check_branch
      %40 = sbr.rel (0) target = $region33
    $region32: #{deberta_classifier_forward.1} parent=1 // pred_region
      _
    $region33: #{deberta_classifier_forward.1} parent=1 // pred_fallthru
      _
    // Predicated region
    $region34: #{deberta_classifier_forward.1} parent=1 // pred_check
      _
    $region35: #{deberta_classifier_forward.1} parent=1 // pred_check_branch
      %42 = sbr.rel (0) target = $region37
    $region36: #{deberta_classifier_forward.1} parent=1 // pred_region
      _
    $region37: #{deberta_classifier_forward.1} parent=1 // pred_fallthru
      _
    // Predicated region
    $region38: #{deberta_classifier_forward.1} parent=1 // pred_check
      _
    $region39: #{deberta_classifier_forward.1} parent=1 // pred_check_branch
      %44 = sbr.rel (0) target = $region41
    $region40: #{deberta_classifier_forward.1} parent=1 // pred_region
      _
    $region41: #{deberta_classifier_forward.1} parent=1 // pred_fallthru
      _
    // Predicated region
    $region42: #{deberta_classifier_forward.1} parent=1 // pred_check
      _
    $region43: #{deberta_classifier_forward.1} parent=1 // pred_check_branch
      %46 = sbr.rel (0) target = $region45
    $region44: #{deberta_classifier_forward.1} parent=1 // pred_region
      _
    $region45: #{deberta_classifier_forward.1} parent=1 // pred_fallthru
      _
    // Predicated region
    $region46: #{deberta_classifier_forward.1} parent=1 // pred_check
      _
    $region47: #{deberta_classifier_forward.1} parent=1 // pred_check_branch
      %48 = sbr.rel (0) target = $region49
    $region48: #{deberta_classifier_forward.1} parent=1 // pred_region
      _
    $region49: #{deberta_classifier_forward.1} parent=1 // pred_fallthru
      _
    // Predicated region
    $region50: #{deberta_classifier_forward.1} parent=1 // pred_check
      _
    $region51: #{deberta_classifier_forward.1} parent=1 // pred_check_branch
      %50 = sbr.rel (0) target = $region53
    $region52: #{deberta_classifier_forward.1} parent=1 // pred_region
      _
    $region53: #{deberta_classifier_forward.1} parent=1 // pred_fallthru
      _
    // Predicated region
    $region54: #{deberta_classifier_forward.1} parent=1 // pred_check
      _
    $region55: #{deberta_classifier_forward.1} parent=1 // pred_check_branch
      %52 = sbr.rel (0) target = $region57
    $region56: #{deberta_classifier_forward.1} parent=1 // pred_region
      _
    $region57: #{deberta_classifier_forward.1} parent=1 // pred_fallthru
      _
    // Predicated region
    $region58: #{deberta_classifier_forward.1} parent=1 // pred_check
      _
    $region59: #{deberta_classifier_forward.1} parent=1 // pred_check_branch
      %54 = sbr.rel (0) target = $region61
    $region60: #{deberta_classifier_forward.1} parent=1 // pred_region
      _
    $region61: #{deberta_classifier_forward.1} parent=1 // pred_fallthru
      _
    // Predicated region
    $region62: #{deberta_classifier_forward.1} parent=1 // pred_check
      _
    $region63: #{deberta_classifier_forward.1} parent=1 // pred_check_branch
      %56 = sbr.rel (0) target = $region65
    $region64: #{deberta_classifier_forward.1} parent=1 // pred_region
      _
    $region65: #{deberta_classifier_forward.1} parent=1 // pred_fallthru
      _
    // Predicated region
    $region66: #{deberta_classifier_forward.1} parent=1 // pred_check
      _
    $region67: #{deberta_classifier_forward.1} parent=1 // pred_check_branch
      %58 = sbr.rel (0) target = $region69
    $region68: #{deberta_classifier_forward.1} parent=1 // pred_region
      _
    $region69: #{deberta_classifier_forward.1} parent=1 // pred_fallthru
      _
    // Predicated region
    $region70: #{deberta_classifier_forward.1} parent=1 // pred_check
      _
    $region71: #{deberta_classifier_forward.1} parent=1 // pred_check_branch
      %60 = sbr.rel (0) target = $region73
    $region72: #{deberta_classifier_forward.1} parent=1 // pred_region
      _
    $region73: #{deberta_classifier_forward.1} parent=1 // pred_fallthru
      _
    // Predicated region
    $region74: #{deberta_classifier_forward.1} parent=1 // pred_check
      _
    $region75: #{deberta_classifier_forward.1} parent=1 // pred_check_branch
      %62 = sbr.rel (0) target = $region77
    $region76: #{deberta_classifier_forward.1} parent=1 // pred_region
      _
    $region77: #{deberta_classifier_forward.1} parent=1 // pred_fallthru
      _
    %v64 = vld [vmem:[%s0] sm:$0xff]
    %v65 = vld [vmem:[%s0 + $0x8] sm:$0xff]
    %v66 = vld [vmem:[%s3] sm:$0x1]
    %v67 = vld [vmem:[%s4] sm:$0x1]
    %vm68 = vcmask 261120
    %v69 = vsel %vm68, %v64, 0.0
    %70 = vadd.xlane.f32.xlu0 %v69
    %v71 = vpop.xlane.xlu0 %70
    %v72 = vsel %vm68, %v65, 0.0
    %73 = vadd.xlane.f32.xlu0 %v72
    %v74 = vpop.xlane.xlu0 %73
    %v75 = vrcp.pop 32.0
    %v76 = vmul.f32 32.0, %v75
    %v77 = vsub.f32 1.0, %v76
    %v78 = vmul.f32 %v75, %v77
    %v79 = vadd.f32 %v75, %v78
    %vm80 = vweird.f32 %v75
    %v81 = vsel %vm80, %v75, %v79
    %v82 = vmul.f32 %v71, %v81
    %v83 = vmul.f32 %v74, %v81
    %v84 = vsub.f32 %v64, %v82
    %v85 = vsub.f32 %v65, %v83
    %v86 = vmul.f32 %v84, %v84
    %v87 = vmul.f32 %v85, %v85
    %v88 = vsel %vm68, %v86, 0.0
    %89 = vadd.xlane.f32.xlu0 %v88
    %v90 = vpop.xlane.xlu0 %89
    %v91 = vsel %vm68, %v87, 0.0
    %92 = vadd.xlane.f32.xlu0 %v91
    %v93 = vpop.xlane.xlu0 %92
    %v94 = vmul.f32 %v90, %v81
    %v95 = vmul.f32 %v93, %v81
    %v96 = vadd.f32 %v94, 1e-07
    %v97 = vadd.f32 %v95, 1e-07
    %v98 = vrsqrt.pop %v96
    %v99 = vmul.f32 %v98, %v96
    %v100 = vmul.f32 %v99, %v98
    %v101 = vmul.f32 0.5, %v100
    %v102 = vsub.f32 1.5, %v101
    %v103 = vmul.f32 %v98, %v102
    %vm104 = vweird.f32 %v96
    %vm105 = vweird.f32 %v98
    %vm106 = vmor %vm104, %vm105
    %v107 = vsel %vm106, %v98, %v103
    %v108 = vrsqrt.pop %v97
    %v109 = vmul.f32 %v108, %v97
    %v110 = vmul.f32 %v109, %v108
    %v111 = vmul.f32 0.5, %v110
    %v112 = vsub.f32 1.5, %v111
    %v113 = vmul.f32 %v108, %v112
    %vm114 = vweird.f32 %v97
    %vm115 = vweird.f32 %v108
    %vm116 = vmor %vm114, %vm115
    %v117 = vsel %vm116, %v108, %v113
    %v118 = vmul.f32 %v84, %v107
    %v119 = vmul.f32 %v85, %v117
    %v121 = vperm.slane %v66, 0
    %v123 = vmul.f32 %v118, %v121
    %v124 = vmul.f32 %v119, %v121
    %v126 = vperm.slane %v67, 0
    %v128 = vadd.f32 %v123, %v126
    %v129 = vadd.f32 %v124, %v126
    %v130 = vld [vmem:[%s1] sm:$0xff]
    %v131 = vld [vmem:[%s1 + $0x8] sm:$0xff]
    %v132 = vld [vmem:[%s1 + $0x10] sm:$0xff]
    %v133 = vld [vmem:[%s1 + $0x18] sm:$0xff]
    %v134 = vld [vmem:[%s2] sm:$0xf]
    %v135 = vld [vmem:[%s5] sm:$0xf]
    %v136 = vld [vmem:[%s5 + $0x4] sm:$0xf]
    %v137 = vld [vmem:[%s5 + $0x8] sm:$0xf]
    %v138 = vld [vmem:[%s5 + $0xc] sm:$0xf]
    %v139 = vpack.c.bf16 %v129, %v128
    %v140 = vld [vmem:[%s6] sm:$0x1]
    %v142 = vperm.slane %v140, 0
    %v148 = vunpack.c.l.b16 %v135
    %v149 = vunpack.c.l.b16 %v136
    %v150 = vunpack.c.l.b16 %v137
    %v151 = vunpack.c.l.b16 %v138
    %v152 = vpack.c.b16 %v149, %v148
    %v153 = vpack.c.b16 %v151, %v150
    %v157 = vsel %vm68, %v139, 0
    %159 = vmatpush.bf16.msra.mxu0 0
    %160 = vmatpush.bf16.msra.mxu0 0
    %161 = vmatpush.bf16.msra.mxu0 0
    %162 = vmatpush.bf16.msra.mxu0 0
    %163 = vmatpush.bf16.msra.mxu0 0
    %164 = vmatpush.bf16.msra.mxu0 0
    %165 = vmatpush.bf16.msra.mxu0 %v153
    %166 = vmatpush.bf16.msra.mxu0 %v152
    %167 = vmatmul.bf16.gmra.mxu0 %v157
    %v168 = vpop.f32.mrf.mxu0
    %v169 = vadd.f32 %v142, %v168
    %v170 = vpop.f32.mrf.mxu0
    %v171 = vadd.f32 %v142, %v170
    %172 = vdwg.mxu0
    %175 = vrot.lane.b32.xlu0 %v169, 112
    %v176 = vpop.permute.xlu0 %175
    %177 = vrot.lane.b32.xlu0 %v171, 112
    %v178 = vpop.permute.xlu0 %177
    %v181 = vpack.c.bf16 %v171, %v169
    %v182 = vpack.c.bf16 %v178, %v176
    %185 = vrot.lane.b32.xlu0 %v181, 96
    %v186 = vpop.permute.xlu0 %185
    %187 = vrot.lane.b32.xlu0 %v182, 96
    %v188 = vpop.permute.xlu0 %187
    %vm189 = vcmask 130048
    %v191 = vsel %vm189, %v181, 0
    %v194 = vsel %vm189, %v182, 0
    %v197 = vsel %vm189, %v186, 0
    %v200 = vsel %vm189, %v188, 0
    %202 = vmatpush.bf16.xpose.msra.mxu0 0
    %203 = vmatpush.bf16.xpose.msra.mxu0 0
    %204 = vmatpush.bf16.xpose.msra.mxu0 0
    %205 = vmatpush.bf16.xpose.msra.mxu0 0
    %206 = vmatpush.bf16.xpose.msra.mxu0 0
    %207 = vmatpush.bf16.xpose.msra.mxu0 0
    %208 = vmatpush.bf16.xpose.msra.mxu0 %v200
    %209 = vmatpush.bf16.xpose.msra.mxu0 %v197
    %210 = vmatmul.bf16.gmra.mxu0 %v191
    %v211 = vpop.f32.mrf.mxu0
    %v212 = vadd.f32 %v130, %v211
    %v213 = vpop.f32.mrf.mxu0
    %v214 = vadd.f32 %v131, %v213
    %215 = vmatmul.bf16.gmra.mxu0 %v194
    %v216 = vpop.f32.mrf.mxu0
    %v217 = vadd.f32 %v132, %v216
    %v218 = vpop.f32.mrf.mxu0
    %v219 = vadd.f32 %v133, %v218
    %220 = vdwg.mxu0
    %v221 = vsel %vm68, %v212, -inf
    %222 = vmax.xlane.f32.xlu0 %v221
    %v223 = vpop.xlane.xlu0 %222
    %v224 = vsel %vm68, %v214, -inf
    %225 = vmax.xlane.f32.xlu0 %v224
    %v226 = vpop.xlane.xlu0 %225
    %v227 = vsel %vm68, %v217, -inf
    %228 = vmax.xlane.f32.xlu0 %v227
    %v229 = vpop.xlane.xlu0 %228
    %v230 = vsel %vm68, %v219, -inf
    %231 = vmax.xlane.f32.xlu0 %v230
    %v232 = vpop.xlane.xlu0 %231
    %v233 = vsub.f32 %v212, %v223
    %v234 = vsub.f32 %v214, %v226
    %v235 = vsub.f32 %v217, %v229
    %v236 = vsub.f32 %v219, %v232
    %v237 = vmul.f32 %v233, 1.442695
    %v238 = vpow.pop %v237
    %v239 = vmul.f32 %v234, 1.442695
    %v240 = vpow.pop %v239
    %v241 = vmul.f32 %v235, 1.442695
    %v242 = vpow.pop %v241
    %v243 = vmul.f32 %v236, 1.442695
    %v244 = vpow.pop %v243
    %v245 = vsel %vm68, %v238, 0.0
    %246 = vadd.xlane.f32.xlu0 %v245
    %v247 = vpop.xlane.xlu0 %246
    %v248 = vsel %vm68, %v240, 0.0
    %249 = vadd.xlane.f32.xlu0 %v248
    %v250 = vpop.xlane.xlu0 %249
    %v251 = vsel %vm68, %v242, 0.0
    %252 = vadd.xlane.f32.xlu0 %v251
    %v253 = vpop.xlane.xlu0 %252
    %v254 = vsel %vm68, %v244, 0.0
    %255 = vadd.xlane.f32.xlu0 %v254
    %v256 = vpop.xlane.xlu0 %255
    %v257 = vrcp.pop %v247
    %v258 = vmul.f32 %v247, %v257
    %v259 = vsub.f32 1.0, %v258
    %v260 = vmul.f32 %v257, %v259
    %v261 = vadd.f32 %v257, %v260
    %vm262 = vweird.f32 %v247
    %vm263 = vweird.f32 %v257
    %vm264 = vmor %vm262, %vm263
    %v265 = vsel %vm264, %v257, %v261
    %v266 = vand.u32 2147483647, %v247
    %vm267 = vcmp.eq.f32.partialorder %v266, 8.507059e+37
    %v268 = vand.u32 %v247, 2147483648
    %v269 = vor.u32 1.1754944e-38, %v268
    %v270 = vsel %vm267, %v269, %v265
    %v271 = vrcp.pop %v250
    %v272 = vmul.f32 %v250, %v271
    %v273 = vsub.f32 1.0, %v272
    %v274 = vmul.f32 %v271, %v273
    %v275 = vadd.f32 %v271, %v274
    %vm276 = vweird.f32 %v250
    %vm277 = vweird.f32 %v271
    %vm278 = vmor %vm276, %vm277
    %v279 = vsel %vm278, %v271, %v275
    %v280 = vand.u32 2147483647, %v250
    %vm281 = vcmp.eq.f32.partialorder %v280, 8.507059e+37
    %v282 = vand.u32 %v250, 2147483648
    %v283 = vor.u32 1.1754944e-38, %v282
    %v284 = vsel %vm281, %v283, %v279
    %v285 = vrcp.pop %v253
    %v286 = vmul.f32 %v253, %v285
    %v287 = vsub.f32 1.0, %v286
    %v288 = vmul.f32 %v285, %v287
    %v289 = vadd.f32 %v285, %v288
    %vm290 = vweird.f32 %v253
    %vm291 = vweird.f32 %v285
    %vm292 = vmor %vm290, %vm291
    %v293 = vsel %vm292, %v285, %v289
    %v294 = vand.u32 2147483647, %v253
    %vm295 = vcmp.eq.f32.partialorder %v294, 8.507059e+37
    %v296 = vand.u32 %v253, 2147483648
    %v297 = vor.u32 1.1754944e-38, %v296
    %v298 = vsel %vm295, %v297, %v293
    %v299 = vrcp.pop %v256
    %v300 = vmul.f32 %v256, %v299
    %v301 = vsub.f32 1.0, %v300
    %v302 = vmul.f32 %v299, %v301
    %v303 = vadd.f32 %v299, %v302
    %vm304 = vweird.f32 %v256
    %vm305 = vweird.f32 %v299
    %vm306 = vmor %vm304, %vm305
    %v307 = vsel %vm306, %v299, %v303
    %v308 = vand.u32 2147483647, %v256
    %vm309 = vcmp.eq.f32.partialorder %v308, 8.507059e+37
    %v310 = vand.u32 %v256, 2147483648
    %v311 = vor.u32 1.1754944e-38, %v310
    %v312 = vsel %vm309, %v311, %v307
    %v313 = vmul.f32 %v238, %v270
    %v314 = vmul.f32 %v240, %v284
    %v315 = vmul.f32 %v242, %v298
    %v316 = vmul.f32 %v244, %v312
    %v317 = vpack.c.bf16 %v314, %v313
    %v318 = vpack.c.bf16 %v316, %v315
    %319 = vrot.lane.b32.xlu0 %v181, 64
    %v320 = vpop.permute.xlu0 %319
    %321 = vrot.lane.b32.xlu0 %v182, 64
    %v322 = vpop.permute.xlu0 %321
    %v326 = vsel %vm68, %v317, 0
    %v329 = vsel %vm68, %v318, 0
    %331 = vmatpush.bf16.msra.mxu0 0
    %332 = vmatpush.bf16.msra.mxu0 0
    %333 = vmatpush.bf16.msra.mxu0 0
    %334 = vmatpush.bf16.msra.mxu0 0
    %335 = vmatpush.bf16.msra.mxu0 0
    %336 = vmatpush.bf16.msra.mxu0 0
    %337 = vmatpush.bf16.msra.mxu0 %v322
    %338 = vmatpush.bf16.msra.mxu0 %v320
    %339 = vmatmul.bf16.gmra.mxu0 %v326
    %v340 = vpop.f32.mrf.mxu0
    %v341 = vadd.f32 0.0, %v340
    %v342 = vpop.f32.mrf.mxu0
    %v343 = vadd.f32 0.0, %v342
    %344 = vmatmul.bf16.gmra.mxu0 %v329
    %v345 = vpop.f32.mrf.mxu0
    %v346 = vadd.f32 0.0, %v345
    %v347 = vpop.f32.mrf.mxu0
    %v348 = vadd.f32 0.0, %v347
    %349 = vdwg.mxu0
    %352 = vrot.lane.b32.xlu0 %v346, 16
    %v353 = vpop.permute.xlu0 %352
    %354 = vrot.lane.b32.xlu0 %v348, 16
    %v355 = vpop.permute.xlu0 %354
    %v358 = vsel %vm189, %v341, %v353
    %v359 = vsel %vm189, %v343, %v355
    %v360 = vld [vmem:[%s7] sm:$0xf]
    %v361 = vld [vmem:[%s7 + $0x4] sm:$0xf]
    %v362 = vld [vmem:[%s7 + $0x8] sm:$0xf]
    %v363 = vld [vmem:[%s7 + $0xc] sm:$0xf]
    %v364 = vpack.c.bf16 %v359, %v358
    %v365 = vld [vmem:[%s8] sm:$0x1]
    %v367 = vperm.slane %v365, 0
    %v373 = vunpack.c.l.b16 %v360
    %v374 = vunpack.c.l.b16 %v361
    %v375 = vunpack.c.l.b16 %v362
    %v376 = vunpack.c.l.b16 %v363
    %v377 = vpack.c.b16 %v374, %v373
    %v378 = vpack.c.b16 %v376, %v375
    %v382 = vsel %vm68, %v364, 0
    %384 = vmatpush.bf16.msra.mxu0 0
    %385 = vmatpush.bf16.msra.mxu0 0
    %386 = vmatpush.bf16.msra.mxu0 0
    %387 = vmatpush.bf16.msra.mxu0 0
    %388 = vmatpush.bf16.msra.mxu0 0
    %389 = vmatpush.bf16.msra.mxu0 0
    %390 = vmatpush.bf16.msra.mxu0 %v378
    %391 = vmatpush.bf16.msra.mxu0 %v377
    %392 = vmatmul.bf16.gmra.mxu0 %v382
    %v393 = vpop.f32.mrf.mxu0
    %v394 = vadd.f32 %v367, %v393
    %v395 = vpop.f32.mrf.mxu0
    %v396 = vadd.f32 %v367, %v395
    %397 = vdwg.mxu0
    %v398 = vadd.f32 %v394, %v128
    %v399 = vadd.f32 %v396, %v129
    %v400 = vld [vmem:[%s9] sm:$0x1]
    %v401 = vld [vmem:[%s10] sm:$0x1]
    %v402 = vsel %vm68, %v398, 0.0
    %403 = vadd.xlane.f32.xlu0 %v402
    %v404 = vpop.xlane.xlu0 %403
    %v405 = vsel %vm68, %v399, 0.0
    %406 = vadd.xlane.f32.xlu0 %v405
    %v407 = vpop.xlane.xlu0 %406
    %v408 = vmul.f32 %v404, %v81
    %v409 = vmul.f32 %v407, %v81
    %v410 = vsub.f32 %v398, %v408
    %v411 = vsub.f32 %v399, %v409
    %v412 = vmul.f32 %v410, %v410
    %v413 = vmul.f32 %v411, %v411
    %v414 = vsel %vm68, %v412, 0.0
    %415 = vadd.xlane.f32.xlu0 %v414
    %v416 = vpop.xlane.xlu0 %415
    %v417 = vsel %vm68, %v413, 0.0
    %418 = vadd.xlane.f32.xlu0 %v417
    %v419 = vpop.xlane.xlu0 %418
    %v420 = vmul.f32 %v416, %v81
    %v421 = vmul.f32 %v419, %v81
    %v422 = vadd.f32 %v420, 1e-07
    %v423 = vadd.f32 %v421, 1e-07
    %v424 = vrsqrt.pop %v422
    %v425 = vmul.f32 %v424, %v422
    %v426 = vmul.f32 %v425, %v424
    %v427 = vmul.f32 0.5, %v426
    %v428 = vsub.f32 1.5, %v427
    %v429 = vmul.f32 %v424, %v428
    %vm430 = vweird.f32 %v422
    %vm431 = vweird.f32 %v424
    %vm432 = vmor %vm430, %vm431
    %v433 = vsel %vm432, %v424, %v429
    %v434 = vrsqrt.pop %v423
    %v435 = vmul.f32 %v434, %v423
    %v436 = vmul.f32 %v435, %v434
    %v437 = vmul.f32 0.5, %v436
    %v438 = vsub.f32 1.5, %v437
    %v439 = vmul.f32 %v434, %v438
    %vm440 = vweird.f32 %v423
    %vm441 = vweird.f32 %v434
    %vm442 = vmor %vm440, %vm441
    %v443 = vsel %vm442, %v434, %v439
    %v444 = vmul.f32 %v410, %v433
    %v445 = vmul.f32 %v411, %v443
    %v447 = vperm.slane %v400, 0
    %v449 = vmul.f32 %v444, %v447
    %v450 = vmul.f32 %v445, %v447
    %v452 = vperm.slane %v401, 0
    %v454 = vadd.f32 %v449, %v452
    %v455 = vadd.f32 %v450, %v452
    %v456 = vld [vmem:[%s11] sm:$0xf]
    %v457 = vld [vmem:[%s11 + $0x4] sm:$0xf]
    %v458 = vld [vmem:[%s11 + $0x8] sm:$0xf]
    %v459 = vld [vmem:[%s11 + $0xc] sm:$0xf]
    %v460 = vld [vmem:[%s12] sm:$0x1]
    %v461 = vld [vmem:[%s13] sm:$0xf]
    %v462 = vld [vmem:[%s13 + $0x4] sm:$0xf]
    %v463 = vld [vmem:[%s13 + $0x8] sm:$0xf]
    %v464 = vld [vmem:[%s13 + $0xc] sm:$0xf]
    %v465 = vld [vmem:[%s13 + $0x10] sm:$0xf]
    %v466 = vld [vmem:[%s13 + $0x14] sm:$0xf]
    %v467 = vld [vmem:[%s13 + $0x18] sm:$0xf]
    %v468 = vld [vmem:[%s13 + $0x1c] sm:$0xf]
    %v469 = vld [vmem:[%s14] sm:$0x1]
    %v470 = vpack.c.bf16 %v455, %v454
    %v472 = vperm.slane %v460, 0
    %v478 = vunpack.c.l.b16 %v456
    %v479 = vunpack.c.l.b16 %v457
    %v480 = vunpack.c.l.b16 %v458
    %v481 = vunpack.c.l.b16 %v459
    %v482 = vpack.c.b16 %v479, %v478
    %v483 = vpack.c.b16 %v481, %v480
    %v487 = vsel %vm68, %v470, 0
    %489 = vmatpush.bf16.msra.mxu0 0
    %490 = vmatpush.bf16.msra.mxu0 0
    %491 = vmatpush.bf16.msra.mxu0 0
    %492 = vmatpush.bf16.msra.mxu0 0
    %493 = vmatpush.bf16.msra.mxu0 0
    %494 = vmatpush.bf16.msra.mxu0 0
    %495 = vmatpush.bf16.msra.mxu0 %v483
    %496 = vmatpush.bf16.msra.mxu0 %v482
    %497 = vmatmul.bf16.gmra.mxu0 %v487
    %v498 = vpop.f32.mrf.mxu0
    %v499 = vadd.f32 %v472, %v498
    %v500 = vpop.f32.mrf.mxu0
    %v501 = vadd.f32 %v472, %v500
    %502 = vdwg.mxu0
    %v503 = vmul.f32 %v499, %v499
    %v504 = vmul.f32 %v501, %v501
    %v505 = vmul.f32 %v499, %v503
    %v506 = vmul.f32 %v501, %v504
    %v507 = vmul.f32 %v505, 0.044715
    %v508 = vmul.f32 %v506, 0.044715
    %v509 = vadd.f32 %v499, %v507
    %v510 = vadd.f32 %v501, %v508
    %v511 = vmul.f32 %v509, 0.7978846
    %v512 = vmul.f32 %v510, 0.7978846
    %v513 = vtanh.pop %v511
    %v514 = vtanh.pop %v512
    %v515 = vadd.f32 %v513, 1.0
    %v516 = vadd.f32 %v514, 1.0
    %v517 = vmul.f32 %v515, 0.5
    %v518 = vmul.f32 %v516, 0.5
    %v519 = vmul.f32 %v499, %v517
    %v520 = vmul.f32 %v501, %v518
    %v521 = vpack.c.bf16 %v520, %v519
    %v523 = vperm.slane %v469, 0
    %v533 = vunpack.c.l.b16 %v461
    %v534 = vunpack.c.l.b16 %v462
    %v535 = vunpack.c.l.b16 %v463
    %v536 = vunpack.c.l.b16 %v464
    %v537 = vunpack.c.l.b16 %v465
    %v538 = vunpack.c.l.b16 %v466
    %v539 = vunpack.c.l.b16 %v467
    %v540 = vunpack.c.l.b16 %v468
    %v541 = vpack.c.b16 %v534, %v533
    %v542 = vpack.c.b16 %v536, %v535
    %v543 = vpack.c.b16 %v538, %v537
    %v544 = vpack.c.b16 %v540, %v539
    %vm549 = vcmask 523264
    %v551 = vsel %vm549, %v521, 0
    %553 = vmatpush.bf16.msra.mxu0 0
    %554 = vmatpush.bf16.msra.mxu0 0
    %555 = vmatpush.bf16.msra.mxu0 0
    %556 = vmatpush.bf16.msra.mxu0 0
    %557 = vmatpush.bf16.msra.mxu0 %v544
    %558 = vmatpush.bf16.msra.mxu0 %v543
    %559 = vmatpush.bf16.msra.mxu0 %v542
    %560 = vmatpush.bf16.msra.mxu0 %v541
    %561 = vmatmul.bf16.gmra.mxu0 %v551
    %v562 = vpop.f32.mrf.mxu0
    %v563 = vadd.f32 %v523, %v562
    %v564 = vpop.f32.mrf.mxu0
    %v565 = vadd.f32 %v523, %v564
    %566 = vdwg.mxu0
    %v567 = vadd.f32 %v563, %v454
    %v568 = vadd.f32 %v565, %v455
    %v569 = vld [vmem:[%s15] sm:$0x1]
    %v570 = vld [vmem:[%s16] sm:$0x1]
    %v571 = vsel %vm68, %v567, 0.0
    %572 = vadd.xlane.f32.xlu0 %v571
    %v573 = vpop.xlane.xlu0 %572
    %v574 = vsel %vm68, %v568, 0.0
    %575 = vadd.xlane.f32.xlu0 %v574
    %v576 = vpop.xlane.xlu0 %575
    %v577 = vmul.f32 %v573, %v81
    %v578 = vmul.f32 %v576, %v81
    %v579 = vsub.f32 %v567, %v577
    %v580 = vsub.f32 %v568, %v578
    %v581 = vmul.f32 %v579, %v579
    %v582 = vmul.f32 %v580, %v580
    %v583 = vsel %vm68, %v581, 0.0
    %584 = vadd.xlane.f32.xlu0 %v583
    %v585 = vpop.xlane.xlu0 %584
    %v586 = vsel %vm68, %v582, 0.0
    %587 = vadd.xlane.f32.xlu0 %v586
    %v588 = vpop.xlane.xlu0 %587
    %v589 = vmul.f32 %v585, %v81
    %v590 = vmul.f32 %v588, %v81
    %v591 = vadd.f32 %v589, 1e-07
    %v592 = vadd.f32 %v590, 1e-07
    %v593 = vrsqrt.pop %v591
    %v594 = vmul.f32 %v593, %v591
    %v595 = vmul.f32 %v594, %v593
    %v596 = vmul.f32 0.5, %v595
    %v597 = vsub.f32 1.5, %v596
    %v598 = vmul.f32 %v593, %v597
    %vm599 = vweird.f32 %v591
    %vm600 = vweird.f32 %v593
    %vm601 = vmor %vm599, %vm600
    %v602 = vsel %vm601, %v593, %v598
    %v603 = vrsqrt.pop %v592
    %v604 = vmul.f32 %v603, %v592
    %v605 = vmul.f32 %v604, %v603
    %v606 = vmul.f32 0.5, %v605
    %v607 = vsub.f32 1.5, %v606
    %v608 = vmul.f32 %v603, %v607
    %vm609 = vweird.f32 %v592
    %vm610 = vweird.f32 %v603
    %vm611 = vmor %vm609, %vm610
    %v612 = vsel %vm611, %v603, %v608
    %v613 = vmul.f32 %v579, %v602
    %v614 = vmul.f32 %v580, %v612
    %v616 = vperm.slane %v569, 0
    %v618 = vmul.f32 %v613, %v616
    %v619 = vmul.f32 %v614, %v616
    %v621 = vperm.slane %v570, 0
    %v623 = vadd.f32 %v618, %v621
    %v624 = vadd.f32 %v619, %v621
    %s625 = scalar_lea.vmem %s5, 16
    %v626 = vld [vmem:[%s625] sm:$0xf]
    %v627 = vld [vmem:[%s625 + $0x4] sm:$0xf]
    %v628 = vld [vmem:[%s625 + $0x8] sm:$0xf]
    %v629 = vld [vmem:[%s625 + $0xc] sm:$0xf]
    %v630 = vpack.c.bf16 %v624, %v623
    %s631 = scalar_lea.vmem %s6, 1
    %v632 = vld [vmem:[%s631] sm:$0x1]
    %v634 = vperm.slane %v632, 0
    %v640 = vunpack.c.l.b16 %v626
    %v641 = vunpack.c.l.b16 %v627
    %v642 = vunpack.c.l.b16 %v628
    %v643 = vunpack.c.l.b16 %v629
    %v644 = vpack.c.b16 %v641, %v640
    %v645 = vpack.c.b16 %v643, %v642
    %v649 = vsel %vm68, %v630, 0
    %651 = vmatpush.bf16.msra.mxu0 0
    %652 = vmatpush.bf16.msra.mxu0 0
    %653 = vmatpush.bf16.msra.mxu0 0
    %654 = vmatpush.bf16.msra.mxu0 0
    %655 = vmatpush.bf16.msra.mxu0 0
    %656 = vmatpush.bf16.msra.mxu0 0
    %657 = vmatpush.bf16.msra.mxu0 %v645
    %658 = vmatpush.bf16.msra.mxu0 %v644
    %659 = vmatmul.bf16.gmra.mxu0 %v649
    %v660 = vpop.f32.mrf.mxu0
    %v661 = vadd.f32 %v634, %v660
    %v662 = vpop.f32.mrf.mxu0
    %v663 = vadd.f32 %v634, %v662
    %664 = vdwg.mxu0
    %667 = vrot.lane.b32.xlu0 %v661, 112
    %v668 = vpop.permute.xlu0 %667
    %669 = vrot.lane.b32.xlu0 %v663, 112
    %v670 = vpop.permute.xlu0 %669
    %v673 = vrot.slane %v663, 7
    %vm675 = vcmask 1040384
    %v676 = vsel %vm675, %v661, %v673
    %v678 = vrot.slane %v624, 7
    %v680 = vsel %vm675, %v623, %v678
    %v682 = vrot.slane %v676, 6
    %683 = vrot.lane.b32.xlu0 %v682, 112
    %v684 = vpop.permute.xlu0 %683
    %vm686 = vcmask 1041408
    %v687 = vsel %vm686, %v676, %v684
    %v688 = vpack.c.bf16 %v687, %v687
    %v689 = vpack.c.bf16 %v663, %v661
    %v690 = vpack.c.bf16 %v670, %v668
    %693 = vrot.lane.b32.xlu0 %v689, 96
    %v694 = vpop.permute.xlu0 %693
    %695 = vrot.lane.b32.xlu0 %v690, 96
    %v696 = vpop.permute.xlu0 %695
    %v698 = vsel %vm189, %v688, 0
    %v701 = vsel %vm189, %v694, 0
    %v704 = vsel %vm189, %v696, 0
    %706 = vmatpush.bf16.xpose.msra.mxu0 0
    %707 = vmatpush.bf16.xpose.msra.mxu0 0
    %708 = vmatpush.bf16.xpose.msra.mxu0 0
    %709 = vmatpush.bf16.xpose.msra.mxu0 0
    %710 = vmatpush.bf16.xpose.msra.mxu0 0
    %711 = vmatpush.bf16.xpose.msra.mxu0 0
    %712 = vmatpush.bf16.xpose.msra.mxu0 %v704
    %713 = vmatpush.bf16.xpose.msra.mxu0 %v701
    %714 = vmatmul.bf16.gmra.mxu0 %v698
    %v715 = vpop.f32.mrf.mxu0
    %v716 = vadd.f32 %v134, %v715
    %v717 = vpop.f32.mrf.mxu0
    %718 = vdwg.mxu0
    %vm719 = vcmask 257024
    %v720 = vsel %vm719, %v716, -inf
    %721 = vmax.xlane.f32.xlu0 %v720
    %v722 = vpop.xlane.xlu0 %721
    %v723 = vsub.f32 %v716, %v722
    %v724 = vmul.f32 %v723, 1.442695
    %v725 = vpow.pop %v724
    %v726 = vsel %vm719, %v725, 0.0
    %727 = vadd.xlane.f32.xlu0 %v726
    %v728 = vpop.xlane.xlu0 %727
    %v729 = vrcp.pop %v728
    %v730 = vmul.f32 %v728, %v729
    %v731 = vsub.f32 1.0, %v730
    %v732 = vmul.f32 %v729, %v731
    %v733 = vadd.f32 %v729, %v732
    %vm734 = vweird.f32 %v728
    %vm735 = vweird.f32 %v729
    %vm736 = vmor %vm734, %vm735
    %v737 = vsel %vm736, %v729, %v733
    %v738 = vand.u32 2147483647, %v728
    %vm739 = vcmp.eq.f32.partialorder %v738, 8.507059e+37
    %v740 = vand.u32 %v728, 2147483648
    %v741 = vor.u32 1.1754944e-38, %v740
    %v742 = vsel %vm739, %v741, %v737
    %v743 = vmul.f32 %v725, %v742
    %v744 = vpack.c.bf16 %v743, %v743
    %745 = vrot.lane.b32.xlu0 %v689, 64
    %v746 = vpop.permute.xlu0 %745
    %747 = vrot.lane.b32.xlu0 %v690, 64
    %v748 = vpop.permute.xlu0 %747
    %v752 = vsel %vm68, %v744, 0
    %754 = vmatpush.bf16.msra.mxu0 0
    %755 = vmatpush.bf16.msra.mxu0 0
    %756 = vmatpush.bf16.msra.mxu0 0
    %757 = vmatpush.bf16.msra.mxu0 0
    %758 = vmatpush.bf16.msra.mxu0 0
    %759 = vmatpush.bf16.msra.mxu0 0
    %760 = vmatpush.bf16.msra.mxu0 %v748
    %761 = vmatpush.bf16.msra.mxu0 %v746
    %762 = vmatmul.bf16.gmra.mxu0 %v752
    %v763 = vpop.f32.mrf.mxu0
    %v764 = vadd.f32 0.0, %v763
    %v765 = vpop.f32.mrf.mxu0
    %766 = vdwg.mxu0
    %v768 = vrot.slane %v764, 2
    %769 = vrot.lane.b32.xlu0 %v768, 16
    %v770 = vpop.permute.xlu0 %769
    %v772 = vsel %vm189, %v764, %v770
    %s773 = scalar_lea.vmem %s7, 16
    %v774 = vld [vmem:[%s773] sm:$0xf]
    %v775 = vld [vmem:[%s773 + $0x4] sm:$0xf]
    %v776 = vld [vmem:[%s773 + $0x8] sm:$0xf]
    %v777 = vld [vmem:[%s773 + $0xc] sm:$0xf]
    %v778 = vpack.c.bf16 %v772, %v772
    %s779 = scalar_lea.vmem %s8, 1
    %v780 = vld [vmem:[%s779] sm:$0x1]
    %v782 = vperm.slane %v780, 0
    %v788 = vunpack.c.l.b16 %v774
    %v789 = vunpack.c.l.b16 %v775
    %v790 = vunpack.c.l.b16 %v776
    %v791 = vunpack.c.l.b16 %v777
    %v792 = vpack.c.b16 %v789, %v788
    %v793 = vpack.c.b16 %v791, %v790
    %v797 = vsel %vm68, %v778, 0
    %799 = vmatpush.bf16.msra.mxu0 0
    %800 = vmatpush.bf16.msra.mxu0 0
    %801 = vmatpush.bf16.msra.mxu0 0
    %802 = vmatpush.bf16.msra.mxu0 0
    %803 = vmatpush.bf16.msra.mxu0 0
    %804 = vmatpush.bf16.msra.mxu0 0
    %805 = vmatpush.bf16.msra.mxu0 %v793
    %806 = vmatpush.bf16.msra.mxu0 %v792
    %807 = vmatmul.bf16.gmra.mxu0 %v797
    %v808 = vpop.f32.mrf.mxu0
    %v809 = vadd.f32 %v782, %v808
    %v810 = vpop.f32.mrf.mxu0
    %811 = vdwg.mxu0
    %v812 = vadd.f32 %v809, %v680
    %s813 = scalar_lea.vmem %s9, 1
    %v814 = vld [vmem:[%s813] sm:$0x1]
    %s815 = scalar_lea.vmem %s10, 1
    %v816 = vld [vmem:[%s815] sm:$0x1]
    %vm817 = vcmask 254976
    %v818 = vsel %vm817, %v812, 0.0
    %819 = vadd.xlane.f32.xlu0 %v818
    %v820 = vpop.xlane.xlu0 %819
    %v821 = vmul.f32 %v820, %v81
    %v822 = vsub.f32 %v812, %v821
    %v823 = vmul.f32 %v822, %v822
    %v824 = vsel %vm817, %v823, 0.0
    %825 = vadd.xlane.f32.xlu0 %v824
    %v826 = vpop.xlane.xlu0 %825
    %v827 = vmul.f32 %v826, %v81
    %v828 = vadd.f32 %v827, 1e-07
    %v829 = vrsqrt.pop %v828
    %v830 = vmul.f32 %v829, %v828
    %v831 = vmul.f32 %v830, %v829
    %v832 = vmul.f32 0.5, %v831
    %v833 = vsub.f32 1.5, %v832
    %v834 = vmul.f32 %v829, %v833
    %vm835 = vweird.f32 %v828
    %vm836 = vweird.f32 %v829
    %vm837 = vmor %vm835, %vm836
    %v838 = vsel %vm837, %v829, %v834
    %v839 = vmul.f32 %v822, %v838
    %v841 = vperm.slane %v814, 0
    %v843 = vmul.f32 %v839, %v841
    %v845 = vperm.slane %v816, 0
    %v847 = vadd.f32 %v843, %v845
    %s848 = scalar_lea.vmem %s11, 16
    %v849 = vld [vmem:[%s848] sm:$0xf]
    %v850 = vld [vmem:[%s848 + $0x4] sm:$0xf]
    %v851 = vld [vmem:[%s848 + $0x8] sm:$0xf]
    %v852 = vld [vmem:[%s848 + $0xc] sm:$0xf]
    %s853 = scalar_lea.vmem %s12, 1
    %v854 = vld [vmem:[%s853] sm:$0x1]
    %s855 = scalar_lea.vmem %s13, 32
    %v856 = vld [vmem:[%s855] sm:$0xf]
    %v857 = vld [vmem:[%s855 + $0x4] sm:$0xf]
    %v858 = vld [vmem:[%s855 + $0x8] sm:$0xf]
    %v859 = vld [vmem:[%s855 + $0xc] sm:$0xf]
    %v860 = vld [vmem:[%s855 + $0x10] sm:$0xf]
    %v861 = vld [vmem:[%s855 + $0x14] sm:$0xf]
    %v862 = vld [vmem:[%s855 + $0x18] sm:$0xf]
    %v863 = vld [vmem:[%s855 + $0x1c] sm:$0xf]
    %s864 = scalar_lea.vmem %s14, 1
    %v865 = vld [vmem:[%s864] sm:$0x1]
    %v866 = vpack.c.bf16 %v847, %v847
    %v868 = vperm.slane %v854, 0
    %v874 = vunpack.c.l.b16 %v849
    %v875 = vunpack.c.l.b16 %v850
    %v876 = vunpack.c.l.b16 %v851
    %v877 = vunpack.c.l.b16 %v852
    %v878 = vpack.c.b16 %v875, %v874
    %v879 = vpack.c.b16 %v877, %v876
    %v883 = vsel %vm68, %v866, 0
    %885 = vmatpush.bf16.msra.mxu0 0
    %886 = vmatpush.bf16.msra.mxu0 0
    %887 = vmatpush.bf16.msra.mxu0 0
    %888 = vmatpush.bf16.msra.mxu0 0
    %889 = vmatpush.bf16.msra.mxu0 0
    %890 = vmatpush.bf16.msra.mxu0 0
    %891 = vmatpush.bf16.msra.mxu0 %v879
    %892 = vmatpush.bf16.msra.mxu0 %v878
    %893 = vmatmul.bf16.gmra.mxu0 %v883
    %v894 = vpop.f32.mrf.mxu0
    %v895 = vadd.f32 %v868, %v894
    %v896 = vpop.f32.mrf.mxu0
    %897 = vdwg.mxu0
    %v898 = vmul.f32 %v895, %v895
    %v899 = vmul.f32 %v895, %v898
    %v900 = vmul.f32 %v899, 0.044715
    %v901 = vadd.f32 %v895, %v900
    %v902 = vmul.f32 %v901, 0.7978846
    %v903 = vtanh.pop %v902
    %v904 = vadd.f32 %v903, 1.0
    %v905 = vmul.f32 %v904, 0.5
    %v906 = vmul.f32 %v895, %v905
    %v907 = vpack.c.bf16 %v906, %v906
    %v909 = vperm.slane %v865, 0
    %v919 = vunpack.c.l.b16 %v856
    %v920 = vunpack.c.l.b16 %v857
    %v921 = vunpack.c.l.b16 %v858
    %v922 = vunpack.c.l.b16 %v859
    %v923 = vunpack.c.l.b16 %v860
    %v924 = vunpack.c.l.b16 %v861
    %v925 = vunpack.c.l.b16 %v862
    %v926 = vunpack.c.l.b16 %v863
    %v927 = vpack.c.b16 %v920, %v919
    %v928 = vpack.c.b16 %v922, %v921
    %v929 = vpack.c.b16 %v924, %v923
    %v930 = vpack.c.b16 %v926, %v925
    %v936 = vsel %vm549, %v907, 0
    %938 = vmatpush.bf16.msra.mxu0 0
    %939 = vmatpush.bf16.msra.mxu0 0
    %940 = vmatpush.bf16.msra.mxu0 0
    %941 = vmatpush.bf16.msra.mxu0 0
    %942 = vmatpush.bf16.msra.mxu0 %v930
    %943 = vmatpush.bf16.msra.mxu0 %v929
    %944 = vmatpush.bf16.msra.mxu0 %v928
    %945 = vmatpush.bf16.msra.mxu0 %v927
    %946 = vmatmul.bf16.gmra.mxu0 %v936
    %v947 = vpop.f32.mrf.mxu0
    %v948 = vadd.f32 %v909, %v947
    %v949 = vpop.f32.mrf.mxu0
    %950 = vdwg.mxu0
    %v951 = vadd.f32 %v948, %v847
    %s952 = scalar_lea.vmem %s15, 1
    %v953 = vld [vmem:[%s952] sm:$0x1]
    %s954 = scalar_lea.vmem %s16, 1
    %v955 = vld [vmem:[%s954] sm:$0x1]
    %v956 = vsel %vm817, %v951, 0.0
    %957 = vadd.xlane.f32.xlu0 %v956
    %v958 = vpop.xlane.xlu0 %957
    %v959 = vmul.f32 %v958, %v81
    %v960 = vsub.f32 %v951, %v959
    %v961 = vmul.f32 %v960, %v960
    %v962 = vsel %vm817, %v961, 0.0
    %963 = vadd.xlane.f32.xlu0 %v962
    %v964 = vpop.xlane.xlu0 %963
    %v965 = vmul.f32 %v964, %v81
    %v966 = vadd.f32 %v965, 1e-07
    %v967 = vrsqrt.pop %v966
    %v968 = vmul.f32 %v967, %v966
    %v969 = vmul.f32 %v968, %v967
    %v970 = vmul.f32 0.5, %v969
    %v971 = vsub.f32 1.5, %v970
    %v972 = vmul.f32 %v967, %v971
    %vm973 = vweird.f32 %v966
    %vm974 = vweird.f32 %v967
    %vm975 = vmor %vm973, %vm974
    %v976 = vsel %vm975, %v967, %v972
    %v977 = vmul.f32 %v960, %v976
    %v979 = vperm.slane %v953, 0
    %v981 = vmul.f32 %v977, %v979
    %v983 = vperm.slane %v955, 0
    %v985 = vadd.f32 %v981, %v983
    %v986 = vld [vmem:[%s17] sm:$0xf]
    %v987 = vld [vmem:[%s17 + $0x4] sm:$0xf]
    %v988 = vld [vmem:[%s17 + $0x8] sm:$0xf]
    %v989 = vld [vmem:[%s17 + $0xc] sm:$0xf]
    %v990 = vpack.c.bf16 %v985, %v985
    %v991 = vld [vmem:[%s18] sm:$0x1]
    %v993 = vperm.slane %v991, 0
    %v999 = vunpack.c.l.b16 %v986
    %v1000 = vunpack.c.l.b16 %v987
    %v1001 = vunpack.c.l.b16 %v988
    %v1002 = vunpack.c.l.b16 %v989
    %v1003 = vpack.c.b16 %v1000, %v999
    %v1004 = vpack.c.b16 %v1002, %v1001
    %v1008 = vsel %vm68, %v990, 0
    %1010 = vmatpush.bf16.msra.mxu0 0
    %1011 = vmatpush.bf16.msra.mxu0 0
    %1012 = vmatpush.bf16.msra.mxu0 0
    %1013 = vmatpush.bf16.msra.mxu0 0
    %1014 = vmatpush.bf16.msra.mxu0 0
    %1015 = vmatpush.bf16.msra.mxu0 0
    %1016 = vmatpush.bf16.msra.mxu0 %v1004
    %1017 = vmatpush.bf16.msra.mxu0 %v1003
    %1018 = vmatmul.bf16.gmra.mxu0 %v1008
    %v1019 = vpop.f32.mrf.mxu0
    %v1020 = vadd.f32 %v993, %v1019
    %v1021 = vpop.f32.mrf.mxu0
    %1022 = vdwg.mxu0
    %1023 = vst [vmem:[#allocation2] sm:$0x3] %v1020
    // Predicated region
    $region78: #{deberta_classifier_forward.1} parent=1 // pred_check
      _
    $region79: #{deberta_classifier_forward.1} parent=1 // pred_check_branch
      %1025 = sbr.rel (0) target = $region81
    $region80: #{deberta_classifier_forward.1} parent=1 // pred_region
      %1027 = vsyncadd [#allocation3], 0
      %s1029 = sshll.u32 [#allocation2], 4
      %s1030 = int_to_ptr.vmem [resolvable:$true] %s1029
      %s1031 = sshll.u32 %s19, 4
      %s1032 = int_to_ptr.hbm [resolvable:$true] %s1031
      %1034 = dma.vmem_to_hbm [thread:$0]  %s1030, 32, %s1032, [#allocation3]
    $region81: #{deberta_classifier_forward.1} parent=1 // pred_fallthru
      _
    // Predicated region
    $region82: #{deberta_classifier_forward.1} parent=1 // pred_check
      _
    $region83: #{deberta_classifier_forward.1} parent=1 // pred_check_branch
      %1036 = sbr.rel (0) target = $region85
    $region84: #{deberta_classifier_forward.1} parent=1 // pred_region
      %1038 = dma.done [#allocation3], 32
    $region85: #{deberta_classifier_forward.1} parent=1 // pred_fallthru
      _
    %1039 = vsyncpa [#allocation3], 1

</llo_original>
